<compile_context>
chip_gen: v5e
topology: v5e:2x2
jax: 0.10.0
libtpu: 0.0.40
codegen_flags: <defaults>
</compile_context>

<pallas_src>
import functools

import jax
import jax.numpy as jnp
from jax.experimental import pallas as pl
from jax.experimental.pallas import tpu as pltpu

# ------------------------- model hyper-parameters ---------------------------
B = 2              # batch
S = 8              # sequence length
H = 128            # hidden size (stands in for 768)
NUM_HEADS = 4
HEAD_DIM = H // NUM_HEADS
FFN = 256          # intermediate size
NUM_LAYERS = 2
VOCAB = 100
CLS_HIDDEN = 64    # config.classifier_second_layer
NUM_LABELS = 4     # config.num_labels
LABEL_PAD = 128    # lane-dense padded classifier output width


# ------------------------------- helpers ------------------------------------
def _layer_norm(x, gamma, beta, eps=1e-5):
    mu = jnp.mean(x, axis=-1, keepdims=True)
    var = jnp.mean(jnp.square(x - mu), axis=-1, keepdims=True)
    return (x - mu) * jax.lax.rsqrt(var + eps) * gamma + beta


# --------------------------- fused forward kernel ----------------------------
def fused_forward_kernel(x_ref, bias_ref, emb_ln_ref,
                         wqkv_ref, bqkv_ref, wo_ref, lvec_ref,
                         w1_ref, b1_ref, w2_ref,
                         cls_w1_ref, cls_w2_ref, cls_b_ref,
                         out_ref, *, num_layers, num_heads, cls_hidden):
    tokens, hidden = x_ref.shape                  # (B*S, H)
    hd = hidden // num_heads
    scale = 1.0 / float(hd) ** 0.5

    # additive attention bias (cross-batch blocks + padded keys), hoisted:
    # built once in the wrapper, loaded once here, reused by every layer.
    bias = bias_ref[...]                          # (NH, B*S, B*S) f32

    # embedding LayerNorm (f32)
    emb_ln = emb_ln_ref[...]                      # (2, H)
    x = _layer_norm(x_ref[...], emb_ln[0:1, :], emb_ln[1:2, :])   # (B*S, H)

    for l in range(num_layers):                   # static unroll
        x_bf = x.astype(jnp.bfloat16)
        lv = lvec_ref[l]                          # (6, H): bo, ln1g, ln1b, b2, ln2g, ln2b

        # ---- fused QKV projection: one (B*S,H)x(H,3H) matmul per layer
        qkv = jnp.dot(x_bf, wqkv_ref[l],
                      preferred_element_type=jnp.float32) + bqkv_ref[l]   # (B*S, 3H)

        # split heads (head-major stacks; slices are static lane slices)
        q_h = jnp.stack([qkv[:, h * hd:(h + 1) * hd]
                         for h in range(num_heads)], axis=0) * scale      # (NH, T, hd)
        k_h = jnp.stack([qkv[:, hidden + h * hd:hidden + (h + 1) * hd]
                         for h in range(num_heads)], axis=0)              # (NH, T, hd)
        v_h = jnp.stack([qkv[:, 2 * hidden + h * hd:2 * hidden + (h + 1) * hd]
                         for h in range(num_heads)], axis=0)              # (NH, T, hd)

        # ---- head-batched attention: one score matmul, one softmax chain,
        #      one context matmul per layer (cross-batch pairs masked by bias)
        s = jnp.einsum('hqd,hkd->hqk',
                       q_h.astype(jnp.bfloat16), k_h.astype(jnp.bfloat16),
                       preferred_element_type=jnp.float32) + bias         # (NH, T, T)
        s = s - jnp.max(s, axis=-1, keepdims=True)
        p = jnp.exp(s)
        p = p * pl.reciprocal(jnp.sum(p, axis=-1, keepdims=True), approx=True)
        ctx = jnp.einsum('hqk,hkd->hqd',
                         p.astype(jnp.bfloat16), v_h.astype(jnp.bfloat16),
                         preferred_element_type=jnp.float32)              # (NH, T, hd)

        # ---- single fused output projection on head-concatenated context
        ctx_cat = jnp.concatenate([ctx[h] for h in range(num_heads)],
                                  axis=-1).astype(jnp.bfloat16)           # (T, H)
        attn = jnp.dot(ctx_cat, wo_ref[l],
                       preferred_element_type=jnp.float32) + lv[0:1]      # + bo

        h1 = _layer_norm(attn + x, lv[1:2], lv[2:3])

        # ---- FFN
        ff = jnp.dot(h1.astype(jnp.bfloat16), w1_ref[l],
                     preferred_element_type=jnp.float32) + b1_ref[l]
        ff = jax.nn.gelu(ff)   # TODO(synk): tanh approx vs erf GELU
        ff = jnp.dot(ff.astype(jnp.bfloat16), w2_ref[l],
                     preferred_element_type=jnp.float32) + lv[3:4]        # + b2
        x = _layer_norm(ff + h1, lv[4:5], lv[5:6])

    # ---- classifier head (dropout = identity, eval mode).
    # Computed for all B*S tokens so the final store is a dense (16,128) vst;
    # the wrapper slices the CLS rows and the NUM_LABELS columns.
    cls_b = cls_b_ref[...]                                                # (2, LABEL_PAD)
    hcls = jnp.dot(x.astype(jnp.bfloat16), cls_w1_ref[...],
                   preferred_element_type=jnp.float32) + cls_b[0:1, :cls_hidden]
    hcls = jnp.maximum(hcls, 0.0)
    out_ref[...] = jnp.dot(hcls.astype(jnp.bfloat16), cls_w2_ref[...],
                           preferred_element_type=jnp.float32) + cls_b[1:2, :]


# ------------------------------ parameter init --------------------------------
def xavier_uniform(key, shape):
    fan_in, fan_out = shape
    limit = (6.0 / (fan_in + fan_out)) ** 0.5
    return jax.random.uniform(key, shape, jnp.float32, -limit, limit)


def init_params(key):
    keys = iter(jax.random.split(key, 32))
    nrm = lambda shape: 0.02 * jax.random.normal(next(keys), shape, jnp.float32)
    bf16 = lambda a: a.astype(jnp.bfloat16)

    wqkv, bqkv, wo, lvec, w1, b1, w2 = ([] for _ in range(7))
    for _ in range(NUM_LAYERS):
        # weights stored [in_features, out_features]; head h owns output
        # columns h*HEAD_DIM:(h+1)*HEAD_DIM of each of the Q/K/V blocks.
        wqkv.append(jnp.concatenate([nrm((H, H)), nrm((H, H)), nrm((H, H))], axis=1))
        bqkv.append(jnp.zeros((1, 3 * H), jnp.float32))
        wo.append(nrm((H, H)))
        lvec.append(jnp.stack([
            jnp.zeros((H,), jnp.float32),   # bo   (attention output bias)
            jnp.ones((H,), jnp.float32),    # ln1 gamma
            jnp.zeros((H,), jnp.float32),   # ln1 beta
            jnp.zeros((H,), jnp.float32),   # b2   (FFN output bias)
            jnp.ones((H,), jnp.float32),    # ln2 gamma
            jnp.zeros((H,), jnp.float32),   # ln2 beta
        ], axis=0))
        w1.append(nrm((H, FFN)))
        b1.append(jnp.zeros((1, FFN), jnp.float32))
        w2.append(nrm((FFN, H)))

    stack = lambda xs: jnp.stack(xs, axis=0)

    # classifier head (xavier_uniform as in the PyTorch __init__); cls_w2 padded
    # to 128 output lanes so the kernel's final store is lane-dense.
    cls_w1 = xavier_uniform(next(keys), (H, CLS_HIDDEN))
    cls_w2 = xavier_uniform(next(keys), (CLS_HIDDEN, NUM_LABELS))
    cls_w2_pad = jnp.zeros((CLS_HIDDEN, LABEL_PAD), jnp.float32)
    cls_w2_pad = cls_w2_pad.at[:, :NUM_LABELS].set(cls_w2)

    return {
        "word_emb": nrm((VOCAB, H)),
        "pos_emb": nrm((S, H)),
        "emb_ln": jnp.concatenate([jnp.ones((1, H), jnp.float32),
                                   jnp.zeros((1, H), jnp.float32)], axis=0),
        # MXU operands stored bf16; accumulation stays f32 inside the kernel.
        "wqkv": bf16(stack(wqkv)), "bqkv": stack(bqkv),
        "wo": bf16(stack(wo)),
        "lvec": stack(lvec),
        "w1": bf16(stack(w1)), "b1": stack(b1),
        "w2": bf16(stack(w2)),
        "cls_w1": bf16(cls_w1),
        "cls_w2": bf16(cls_w2_pad),
        # row 0: classifier hidden bias (first CLS_HIDDEN lanes), row 1: label bias
        "cls_b": jnp.zeros((2, LABEL_PAD), jnp.float32),
    }


# -------------------------------- forward ------------------------------------
@jax.jit
def roberta_classifier_forward(params, input_ids, attention_mask):
    """input_ids: (B,S) int32, attention_mask: (B,S) {0,1}. Returns (B, NUM_LABELS)."""
    bsz, seq = input_ids.shape
    tokens = bsz * seq

    # embedding gather -- plain-JAX glue
    x = params["word_emb"][input_ids] + params["pos_emb"][jnp.arange(seq)][None]
    x = x.reshape(tokens, H).astype(jnp.float32)

    # precomputed additive attention bias: query token (b,sq) may attend to key
    # token (b',sk) iff b==b' and attention_mask[b',sk]==1 (block-diagonal over
    # batch + padding mask), replicated per head so the kernel never broadcasts.
    tok_b = jnp.repeat(jnp.arange(bsz), seq)                        # (T,)
    key_valid = attention_mask.reshape(-1) > 0                      # (T,)
    allowed = (tok_b[:, None] == tok_b[None, :]) & key_valid[None, :]
    attn_bias = jnp.where(allowed, 0.0, -1e9).astype(jnp.float32)   # (T, T)
    attn_bias = jnp.broadcast_to(attn_bias[None], (NUM_HEADS, tokens, tokens))

    vmem = pl.BlockSpec(memory_space=pltpu.MemorySpace.VMEM)
    logits_all = pl.pallas_call(
        functools.partial(fused_forward_kernel, num_layers=NUM_LAYERS,
                          num_heads=NUM_HEADS, cls_hidden=CLS_HIDDEN),
        out_shape=jax.ShapeDtypeStruct((tokens, LABEL_PAD), jnp.float32),
        in_specs=[vmem] * 13,
        out_specs=vmem,
    )(x, attn_bias, params["emb_ln"],
      params["wqkv"], params["bqkv"], params["wo"], params["lvec"],
      params["w1"], params["b1"], params["w2"],
      params["cls_w1"], params["cls_w2"], params["cls_b"])

    # select CLS rows (token 0 of each sequence) and the real label columns
    return logits_all.reshape(bsz, seq, LABEL_PAD)[:, 0, :NUM_LABELS]


# --------------------------------- main ---------------------------------------
if __name__ == "__main__":
    key = jax.random.PRNGKey(0)
    k_param, k_ids = jax.random.split(key)

    params = init_params(k_param)
    input_ids = jax.random.randint(k_ids, (B, S), 0, VOCAB, dtype=jnp.int32)
    attention_mask = jnp.ones((B, S), jnp.int32).at[1, 6:].set(0)  # pad 2nd seq

    logits = roberta_classifier_forward(params, input_ids, attention_mask)
    jax.block_until_ready(logits)

    assert logits.shape == (B, NUM_LABELS)
    assert logits.dtype == jnp.float32
    assert bool(jnp.all(jnp.isfinite(logits)))
    print("KERNEL_OK")
</pallas_src>

<mosaic_0001>
module attributes {stable_mosaic.version = 11 : i64} {
  func.func @fused_forward_kernel(%arg0: memref<16x128xf32, #tpu.memory_space<vmem>>, %arg1: memref<4x16x16xf32, #tpu.memory_space<vmem>>, %arg2: memref<2x128xf32, #tpu.memory_space<vmem>>, %arg3: memref<2x128x384xbf16, #tpu.memory_space<vmem>>, %arg4: memref<2x1x384xf32, #tpu.memory_space<vmem>>, %arg5: memref<2x128x128xbf16, #tpu.memory_space<vmem>>, %arg6: memref<2x6x128xf32, #tpu.memory_space<vmem>>, %arg7: memref<2x128x256xbf16, #tpu.memory_space<vmem>>, %arg8: memref<2x1x256xf32, #tpu.memory_space<vmem>>, %arg9: memref<2x256x128xbf16, #tpu.memory_space<vmem>>, %arg10: memref<128x64xbf16, #tpu.memory_space<vmem>>, %arg11: memref<64x128xbf16, #tpu.memory_space<vmem>>, %arg12: memref<2x128xf32, #tpu.memory_space<vmem>>, %arg13: memref<16x128xf32, #tpu.memory_space<vmem>>) attributes {dimension_semantics = [], scalar_prefetch = 0 : i64, scratch_operands = 0 : i64, tpu.core_type = #tpu.core_type<tc>} {
    %c0 = arith.constant 0 : index
    %c0_0 = arith.constant 0 : index
    %c0_1 = arith.constant 0 : index
    %0 = vector.load %arg1[%c0, %c0_0, %c0_1] : memref<4x16x16xf32, #tpu.memory_space<vmem>>, vector<4x16x16xf32>
    %c0_2 = arith.constant 0 : index
    %c0_3 = arith.constant 0 : index
    %1 = vector.load %arg2[%c0_2, %c0_3] : memref<2x128xf32, #tpu.memory_space<vmem>>, vector<2x128xf32>
    %c0_4 = arith.constant 0 : index
    %c0_5 = arith.constant 0 : index
    %2 = vector.load %arg0[%c0_4, %c0_5] : memref<16x128xf32, #tpu.memory_space<vmem>>, vector<16x128xf32>
    %3 = vector.extract_strided_slice %1 {offsets = [0, 0], sizes = [1, 128], strides = [1, 1]} : vector<2x128xf32> to vector<1x128xf32>
    %4 = vector.extract_strided_slice %1 {offsets = [1, 0], sizes = [1, 128], strides = [1, 1]} : vector<2x128xf32> to vector<1x128xf32>
    %cst = arith.constant dense<0.000000e+00> : vector<16xf32>
    %5 = vector.multi_reduction <add>, %2, %cst [1] : vector<16x128xf32> to vector<16xf32>
    %6 = vector.shape_cast %5 : vector<16xf32> to vector<16x1xf32>
    %cst_6 = arith.constant 1.280000e+02 : f32
    %7 = vector.broadcast %cst_6 : f32 to vector<16x1xf32>
    %8 = arith.divf %6, %7 : vector<16x1xf32>
    %9 = vector.broadcast %8 : vector<16x1xf32> to vector<16x128xf32>
    %10 = arith.subf %2, %9 : vector<16x128xf32>
    %11 = arith.mulf %10, %10 : vector<16x128xf32>
    %cst_7 = arith.constant dense<0.000000e+00> : vector<16xf32>
    %12 = vector.multi_reduction <add>, %11, %cst_7 [1] : vector<16x128xf32> to vector<16xf32>
    %13 = vector.shape_cast %12 : vector<16xf32> to vector<16x1xf32>
    %cst_8 = arith.constant 1.280000e+02 : f32
    %14 = vector.broadcast %cst_8 : f32 to vector<16x1xf32>
    %15 = arith.divf %13, %14 : vector<16x1xf32>
    %16 = vector.broadcast %8 : vector<16x1xf32> to vector<16x128xf32>
    %17 = arith.subf %2, %16 : vector<16x128xf32>
    %cst_9 = arith.constant 9.99999974E-6 : f32
    %18 = vector.broadcast %cst_9 : f32 to vector<16x1xf32>
    %19 = arith.addf %15, %18 : vector<16x1xf32>
    %20 = math.rsqrt %19 : vector<16x1xf32>
    %21 = vector.broadcast %20 : vector<16x1xf32> to vector<16x128xf32>
    %22 = arith.mulf %17, %21 : vector<16x128xf32>
    %23 = vector.broadcast %3 : vector<1x128xf32> to vector<16x128xf32>
    %24 = arith.mulf %22, %23 : vector<16x128xf32>
    %25 = vector.broadcast %4 : vector<1x128xf32> to vector<16x128xf32>
    %26 = arith.addf %24, %25 : vector<16x128xf32>
    %27 = arith.truncf %26 : vector<16x128xf32> to vector<16x128xbf16>
    %c0_10 = arith.constant 0 : index
    %c0_11 = arith.constant 0 : index
    %c0_12 = arith.constant 0 : index
    %28 = vector.load %arg6[%c0_10, %c0_11, %c0_12] : memref<2x6x128xf32, #tpu.memory_space<vmem>>, vector<1x6x128xf32>
    %29 = vector.shape_cast %28 : vector<1x6x128xf32> to vector<6x128xf32>
    %c0_13 = arith.constant 0 : index
    %c0_14 = arith.constant 0 : index
    %c0_15 = arith.constant 0 : index
    %30 = vector.load %arg3[%c0_13, %c0_14, %c0_15] : memref<2x128x384xbf16, #tpu.memory_space<vmem>>, vector<1x128x384xbf16>
    %31 = vector.shape_cast %30 : vector<1x128x384xbf16> to vector<128x384xbf16>
    %cst_16 = arith.constant dense<0.000000e+00> : vector<16x384xf32>
    %32 = tpu.matmul %27, %31, %cst_16 {dimension_numbers = #tpu.dot_dimension_numbers<[1], [0], [0], [1], [0, 0, 1, 1], [], []>} : vector<16x128xbf16>, vector<128x384xbf16>, vector<16x384xf32> -> vector<16x384xf32>
    %c0_17 = arith.constant 0 : index
    %c0_18 = arith.constant 0 : index
    %c0_19 = arith.constant 0 : index
    %33 = vector.load %arg4[%c0_17, %c0_18, %c0_19] : memref<2x1x384xf32, #tpu.memory_space<vmem>>, vector<1x1x384xf32>
    %34 = vector.shape_cast %33 : vector<1x1x384xf32> to vector<1x384xf32>
    %35 = vector.broadcast %34 : vector<1x384xf32> to vector<16x384xf32>
    %36 = arith.addf %32, %35 : vector<16x384xf32>
    %37 = vector.extract_strided_slice %36 {offsets = [0, 0], sizes = [16, 32], strides = [1, 1]} : vector<16x384xf32> to vector<16x32xf32>
    %38 = vector.extract_strided_slice %36 {offsets = [0, 32], sizes = [16, 32], strides = [1, 1]} : vector<16x384xf32> to vector<16x32xf32>
    %39 = vector.extract_strided_slice %36 {offsets = [0, 64], sizes = [16, 32], strides = [1, 1]} : vector<16x384xf32> to vector<16x32xf32>
    %40 = vector.extract_strided_slice %36 {offsets = [0, 96], sizes = [16, 32], strides = [1, 1]} : vector<16x384xf32> to vector<16x32xf32>
    %41 = vector.shape_cast %37 : vector<16x32xf32> to vector<1x16x32xf32>
    %42 = vector.shape_cast %38 : vector<16x32xf32> to vector<1x16x32xf32>
    %43 = vector.shape_cast %39 : vector<16x32xf32> to vector<1x16x32xf32>
    %44 = vector.shape_cast %40 : vector<16x32xf32> to vector<1x16x32xf32>
    %45 = tpu.concatenate %41, %42, %43, %44 in 0 : vector<1x16x32xf32>, vector<1x16x32xf32>, vector<1x16x32xf32>, vector<1x16x32xf32> -> vector<4x16x32xf32>
    %cst_20 = arith.constant 0.176776692 : f32
    %46 = vector.broadcast %cst_20 : f32 to vector<4x16x32xf32>
    %47 = arith.mulf %45, %46 : vector<4x16x32xf32>
    %48 = vector.extract_strided_slice %36 {offsets = [0, 128], sizes = [16, 32], strides = [1, 1]} : vector<16x384xf32> to vector<16x32xf32>
    %49 = vector.extract_strided_slice %36 {offsets = [0, 160], sizes = [16, 32], strides = [1, 1]} : vector<16x384xf32> to vector<16x32xf32>
    %50 = vector.extract_strided_slice %36 {offsets = [0, 192], sizes = [16, 32], strides = [1, 1]} : vector<16x384xf32> to vector<16x32xf32>
    %51 = vector.extract_strided_slice %36 {offsets = [0, 224], sizes = [16, 32], strides = [1, 1]} : vector<16x384xf32> to vector<16x32xf32>
    %52 = vector.shape_cast %48 : vector<16x32xf32> to vector<1x16x32xf32>
    %53 = vector.shape_cast %49 : vector<16x32xf32> to vector<1x16x32xf32>
    %54 = vector.shape_cast %50 : vector<16x32xf32> to vector<1x16x32xf32>
    %55 = vector.shape_cast %51 : vector<16x32xf32> to vector<1x16x32xf32>
    %56 = tpu.concatenate %52, %53, %54, %55 in 0 : vector<1x16x32xf32>, vector<1x16x32xf32>, vector<1x16x32xf32>, vector<1x16x32xf32> -> vector<4x16x32xf32>
    %57 = vector.extract_strided_slice %36 {offsets = [0, 256], sizes = [16, 32], strides = [1, 1]} : vector<16x384xf32> to vector<16x32xf32>
    %58 = vector.extract_strided_slice %36 {offsets = [0, 288], sizes = [16, 32], strides = [1, 1]} : vector<16x384xf32> to vector<16x32xf32>
    %59 = vector.extract_strided_slice %36 {offsets = [0, 320], sizes = [16, 32], strides = [1, 1]} : vector<16x384xf32> to vector<16x32xf32>
    %60 = vector.extract_strided_slice %36 {offsets = [0, 352], sizes = [16, 32], strides = [1, 1]} : vector<16x384xf32> to vector<16x32xf32>
    %61 = vector.shape_cast %57 : vector<16x32xf32> to vector<1x16x32xf32>
    %62 = vector.shape_cast %58 : vector<16x32xf32> to vector<1x16x32xf32>
    %63 = vector.shape_cast %59 : vector<16x32xf32> to vector<1x16x32xf32>
    %64 = vector.shape_cast %60 : vector<16x32xf32> to vector<1x16x32xf32>
    %65 = tpu.concatenate %61, %62, %63, %64 in 0 : vector<1x16x32xf32>, vector<1x16x32xf32>, vector<1x16x32xf32>, vector<1x16x32xf32> -> vector<4x16x32xf32>
    %66 = arith.truncf %47 : vector<4x16x32xf32> to vector<4x16x32xbf16>
    %67 = arith.truncf %56 : vector<4x16x32xf32> to vector<4x16x32xbf16>
    "tpu.trace_start"() <{level = 10 : i32, message = "hqd,hkd->hqk"}> : () -> ()
    %cst_21 = arith.constant dense<0.000000e+00> : vector<4x16x16xf32>
    %68 = tpu.matmul %66, %67, %cst_21 {dimension_numbers = #tpu.dot_dimension_numbers<[2], [2], [1], [1], [0, 0, 0, 1, 1, 1], [0], [0]>} : vector<4x16x32xbf16>, vector<4x16x32xbf16>, vector<4x16x16xf32> -> vector<4x16x16xf32>
    "tpu.trace_stop"() : () -> ()
    %69 = arith.addf %68, %0 : vector<4x16x16xf32>
    %cst_22 = arith.constant dense<0xFF800000> : vector<4x16xf32>
    %70 = vector.multi_reduction <maximumf>, %69, %cst_22 [2] : vector<4x16x16xf32> to vector<4x16xf32>
    %71 = vector.shape_cast %70 : vector<4x16xf32> to vector<4x16x1xf32>
    %72 = vector.broadcast %71 : vector<4x16x1xf32> to vector<4x16x16xf32>
    %73 = arith.subf %69, %72 : vector<4x16x16xf32>
    %74 = math.exp %73 : vector<4x16x16xf32>
    %cst_23 = arith.constant dense<0.000000e+00> : vector<4x16xf32>
    %75 = vector.multi_reduction <add>, %74, %cst_23 [2] : vector<4x16x16xf32> to vector<4x16xf32>
    %76 = vector.shape_cast %75 : vector<4x16xf32> to vector<4x16x1xf32>
    %77 = tpu.reciprocal %76 {approx = true} : vector<4x16x1xf32> -> vector<4x16x1xf32>
    %78 = vector.broadcast %77 : vector<4x16x1xf32> to vector<4x16x16xf32>
    %79 = arith.mulf %74, %78 : vector<4x16x16xf32>
    %80 = arith.truncf %79 : vector<4x16x16xf32> to vector<4x16x16xbf16>
    %81 = arith.truncf %65 : vector<4x16x32xf32> to vector<4x16x32xbf16>
    "tpu.trace_start"() <{level = 10 : i32, message = "hqk,hkd->hqd"}> : () -> ()
    %cst_24 = arith.constant dense<0.000000e+00> : vector<4x16x32xf32>
    %82 = tpu.matmul %80, %81, %cst_24 {dimension_numbers = #tpu.dot_dimension_numbers<[2], [1], [1], [2], [0, 0, 0, 1, 1, 2], [0], [0]>} : vector<4x16x16xbf16>, vector<4x16x32xbf16>, vector<4x16x32xf32> -> vector<4x16x32xf32>
    "tpu.trace_stop"() : () -> ()
    %83 = vector.extract_strided_slice %82 {offsets = [0, 0, 0], sizes = [1, 16, 32], strides = [1, 1, 1]} : vector<4x16x32xf32> to vector<1x16x32xf32>
    %84 = vector.shape_cast %83 : vector<1x16x32xf32> to vector<16x32xf32>
    %85 = vector.extract_strided_slice %82 {offsets = [1, 0, 0], sizes = [1, 16, 32], strides = [1, 1, 1]} : vector<4x16x32xf32> to vector<1x16x32xf32>
    %86 = vector.shape_cast %85 : vector<1x16x32xf32> to vector<16x32xf32>
    %87 = vector.extract_strided_slice %82 {offsets = [2, 0, 0], sizes = [1, 16, 32], strides = [1, 1, 1]} : vector<4x16x32xf32> to vector<1x16x32xf32>
    %88 = vector.shape_cast %87 : vector<1x16x32xf32> to vector<16x32xf32>
    %89 = vector.extract_strided_slice %82 {offsets = [3, 0, 0], sizes = [1, 16, 32], strides = [1, 1, 1]} : vector<4x16x32xf32> to vector<1x16x32xf32>
    %90 = vector.shape_cast %89 : vector<1x16x32xf32> to vector<16x32xf32>
    %91 = tpu.concatenate %84, %86, %88, %90 in 1 : vector<16x32xf32>, vector<16x32xf32>, vector<16x32xf32>, vector<16x32xf32> -> vector<16x128xf32>
    %92 = arith.truncf %91 : vector<16x128xf32> to vector<16x128xbf16>
    %c0_25 = arith.constant 0 : index
    %c0_26 = arith.constant 0 : index
    %c0_27 = arith.constant 0 : index
    %93 = vector.load %arg5[%c0_25, %c0_26, %c0_27] : memref<2x128x128xbf16, #tpu.memory_space<vmem>>, vector<1x128x128xbf16>
    %94 = vector.shape_cast %93 : vector<1x128x128xbf16> to vector<128x128xbf16>
    %cst_28 = arith.constant dense<0.000000e+00> : vector<16x128xf32>
    %95 = tpu.matmul %92, %94, %cst_28 {dimension_numbers = #tpu.dot_dimension_numbers<[1], [0], [0], [1], [0, 0, 1, 1], [], []>} : vector<16x128xbf16>, vector<128x128xbf16>, vector<16x128xf32> -> vector<16x128xf32>
    %96 = vector.extract_strided_slice %29 {offsets = [0, 0], sizes = [1, 128], strides = [1, 1]} : vector<6x128xf32> to vector<1x128xf32>
    %97 = vector.broadcast %96 : vector<1x128xf32> to vector<16x128xf32>
    %98 = arith.addf %95, %97 : vector<16x128xf32>
    %99 = arith.addf %98, %26 : vector<16x128xf32>
    %100 = vector.extract_strided_slice %29 {offsets = [1, 0], sizes = [1, 128], strides = [1, 1]} : vector<6x128xf32> to vector<1x128xf32>
    %101 = vector.extract_strided_slice %29 {offsets = [2, 0], sizes = [1, 128], strides = [1, 1]} : vector<6x128xf32> to vector<1x128xf32>
    %cst_29 = arith.constant dense<0.000000e+00> : vector<16xf32>
    %102 = vector.multi_reduction <add>, %99, %cst_29 [1] : vector<16x128xf32> to vector<16xf32>
    %103 = vector.shape_cast %102 : vector<16xf32> to vector<16x1xf32>
    %cst_30 = arith.constant 1.280000e+02 : f32
    %104 = vector.broadcast %cst_30 : f32 to vector<16x1xf32>
    %105 = arith.divf %103, %104 : vector<16x1xf32>
    %106 = vector.broadcast %105 : vector<16x1xf32> to vector<16x128xf32>
    %107 = arith.subf %99, %106 : vector<16x128xf32>
    %108 = arith.mulf %107, %107 : vector<16x128xf32>
    %cst_31 = arith.constant dense<0.000000e+00> : vector<16xf32>
    %109 = vector.multi_reduction <add>, %108, %cst_31 [1] : vector<16x128xf32> to vector<16xf32>
    %110 = vector.shape_cast %109 : vector<16xf32> to vector<16x1xf32>
    %cst_32 = arith.constant 1.280000e+02 : f32
    %111 = vector.broadcast %cst_32 : f32 to vector<16x1xf32>
    %112 = arith.divf %110, %111 : vector<16x1xf32>
    %113 = vector.broadcast %105 : vector<16x1xf32> to vector<16x128xf32>
    %114 = arith.subf %99, %113 : vector<16x128xf32>
    %cst_33 = arith.constant 9.99999974E-6 : f32
    %115 = vector.broadcast %cst_33 : f32 to vector<16x1xf32>
    %116 = arith.addf %112, %115 : vector<16x1xf32>
    %117 = math.rsqrt %116 : vector<16x1xf32>
    %118 = vector.broadcast %117 : vector<16x1xf32> to vector<16x128xf32>
    %119 = arith.mulf %114, %118 : vector<16x128xf32>
    %120 = vector.broadcast %100 : vector<1x128xf32> to vector<16x128xf32>
    %121 = arith.mulf %119, %120 : vector<16x128xf32>
    %122 = vector.broadcast %101 : vector<1x128xf32> to vector<16x128xf32>
    %123 = arith.addf %121, %122 : vector<16x128xf32>
    %124 = arith.truncf %123 : vector<16x128xf32> to vector<16x128xbf16>
    %c0_34 = arith.constant 0 : index
    %c0_35 = arith.constant 0 : index
    %c0_36 = arith.constant 0 : index
    %125 = vector.load %arg7[%c0_34, %c0_35, %c0_36] : memref<2x128x256xbf16, #tpu.memory_space<vmem>>, vector<1x128x256xbf16>
    %126 = vector.shape_cast %125 : vector<1x128x256xbf16> to vector<128x256xbf16>
    %cst_37 = arith.constant dense<0.000000e+00> : vector<16x256xf32>
    %127 = tpu.matmul %124, %126, %cst_37 {dimension_numbers = #tpu.dot_dimension_numbers<[1], [0], [0], [1], [0, 0, 1, 1], [], []>} : vector<16x128xbf16>, vector<128x256xbf16>, vector<16x256xf32> -> vector<16x256xf32>
    %c0_38 = arith.constant 0 : index
    %c0_39 = arith.constant 0 : index
    %c0_40 = arith.constant 0 : index
    %128 = vector.load %arg8[%c0_38, %c0_39, %c0_40] : memref<2x1x256xf32, #tpu.memory_space<vmem>>, vector<1x1x256xf32>
    %129 = vector.shape_cast %128 : vector<1x1x256xf32> to vector<1x256xf32>
    %130 = vector.broadcast %129 : vector<1x256xf32> to vector<16x256xf32>
    %131 = arith.addf %127, %130 : vector<16x256xf32>
    %132 = arith.mulf %131, %131 : vector<16x256xf32>
    %133 = arith.mulf %131, %132 : vector<16x256xf32>
    %cst_41 = arith.constant 4.471500e-02 : f32
    %134 = vector.broadcast %cst_41 : f32 to vector<16x256xf32>
    %135 = arith.mulf %134, %133 : vector<16x256xf32>
    %136 = arith.addf %131, %135 : vector<16x256xf32>
    %cst_42 = arith.constant 0.797884583 : f32
    %137 = vector.broadcast %cst_42 : f32 to vector<16x256xf32>
    %138 = arith.mulf %137, %136 : vector<16x256xf32>
    %139 = math.tanh %138 : vector<16x256xf32>
    %cst_43 = arith.constant 1.000000e+00 : f32
    %140 = vector.broadcast %cst_43 : f32 to vector<16x256xf32>
    %141 = arith.addf %140, %139 : vector<16x256xf32>
    %cst_44 = arith.constant 5.000000e-01 : f32
    %142 = vector.broadcast %cst_44 : f32 to vector<16x256xf32>
    %143 = arith.mulf %142, %141 : vector<16x256xf32>
    %144 = arith.mulf %131, %143 : vector<16x256xf32>
    %145 = arith.truncf %144 : vector<16x256xf32> to vector<16x256xbf16>
    %c0_45 = arith.constant 0 : index
    %c0_46 = arith.constant 0 : index
    %c0_47 = arith.constant 0 : index
    %146 = vector.load %arg9[%c0_45, %c0_46, %c0_47] : memref<2x256x128xbf16, #tpu.memory_space<vmem>>, vector<1x256x128xbf16>
    %147 = vector.shape_cast %146 : vector<1x256x128xbf16> to vector<256x128xbf16>
    %cst_48 = arith.constant dense<0.000000e+00> : vector<16x128xf32>
    %148 = tpu.matmul %145, %147, %cst_48 {dimension_numbers = #tpu.dot_dimension_numbers<[1], [0], [0], [1], [0, 0, 1, 1], [], []>} : vector<16x256xbf16>, vector<256x128xbf16>, vector<16x128xf32> -> vector<16x128xf32>
    %149 = vector.extract_strided_slice %29 {offsets = [3, 0], sizes = [1, 128], strides = [1, 1]} : vector<6x128xf32> to vector<1x128xf32>
    %150 = vector.broadcast %149 : vector<1x128xf32> to vector<16x128xf32>
    %151 = arith.addf %148, %150 : vector<16x128xf32>
    %152 = arith.addf %151, %123 : vector<16x128xf32>
    %153 = vector.extract_strided_slice %29 {offsets = [4, 0], sizes = [1, 128], strides = [1, 1]} : vector<6x128xf32> to vector<1x128xf32>
    %154 = vector.extract_strided_slice %29 {offsets = [5, 0], sizes = [1, 128], strides = [1, 1]} : vector<6x128xf32> to vector<1x128xf32>
    %cst_49 = arith.constant dense<0.000000e+00> : vector<16xf32>
    %155 = vector.multi_reduction <add>, %152, %cst_49 [1] : vector<16x128xf32> to vector<16xf32>
    %156 = vector.shape_cast %155 : vector<16xf32> to vector<16x1xf32>
    %cst_50 = arith.constant 1.280000e+02 : f32
    %157 = vector.broadcast %cst_50 : f32 to vector<16x1xf32>
    %158 = arith.divf %156, %157 : vector<16x1xf32>
    %159 = vector.broadcast %158 : vector<16x1xf32> to vector<16x128xf32>
    %160 = arith.subf %152, %159 : vector<16x128xf32>
    %161 = arith.mulf %160, %160 : vector<16x128xf32>
    %cst_51 = arith.constant dense<0.000000e+00> : vector<16xf32>
    %162 = vector.multi_reduction <add>, %161, %cst_51 [1] : vector<16x128xf32> to vector<16xf32>
    %163 = vector.shape_cast %162 : vector<16xf32> to vector<16x1xf32>
    %cst_52 = arith.constant 1.280000e+02 : f32
    %164 = vector.broadcast %cst_52 : f32 to vector<16x1xf32>
    %165 = arith.divf %163, %164 : vector<16x1xf32>
    %166 = vector.broadcast %158 : vector<16x1xf32> to vector<16x128xf32>
    %167 = arith.subf %152, %166 : vector<16x128xf32>
    %cst_53 = arith.constant 9.99999974E-6 : f32
    %168 = vector.broadcast %cst_53 : f32 to vector<16x1xf32>
    %169 = arith.addf %165, %168 : vector<16x1xf32>
    %170 = math.rsqrt %169 : vector<16x1xf32>
    %171 = vector.broadcast %170 : vector<16x1xf32> to vector<16x128xf32>
    %172 = arith.mulf %167, %171 : vector<16x128xf32>
    %173 = vector.broadcast %153 : vector<1x128xf32> to vector<16x128xf32>
    %174 = arith.mulf %172, %173 : vector<16x128xf32>
    %175 = vector.broadcast %154 : vector<1x128xf32> to vector<16x128xf32>
    %176 = arith.addf %174, %175 : vector<16x128xf32>
    %177 = arith.truncf %176 : vector<16x128xf32> to vector<16x128xbf16>
    %c1 = arith.constant 1 : index
    %c0_54 = arith.constant 0 : index
    %c0_55 = arith.constant 0 : index
    %178 = vector.load %arg6[%c1, %c0_54, %c0_55] : memref<2x6x128xf32, #tpu.memory_space<vmem>>, vector<1x6x128xf32>
    %179 = vector.shape_cast %178 : vector<1x6x128xf32> to vector<6x128xf32>
    %c1_56 = arith.constant 1 : index
    %c0_57 = arith.constant 0 : index
    %c0_58 = arith.constant 0 : index
    %180 = vector.load %arg3[%c1_56, %c0_57, %c0_58] : memref<2x128x384xbf16, #tpu.memory_space<vmem>>, vector<1x128x384xbf16>
    %181 = vector.shape_cast %180 : vector<1x128x384xbf16> to vector<128x384xbf16>
    %cst_59 = arith.constant dense<0.000000e+00> : vector<16x384xf32>
    %182 = tpu.matmul %177, %181, %cst_59 {dimension_numbers = #tpu.dot_dimension_numbers<[1], [0], [0], [1], [0, 0, 1, 1], [], []>} : vector<16x128xbf16>, vector<128x384xbf16>, vector<16x384xf32> -> vector<16x384xf32>
    %c1_60 = arith.constant 1 : index
    %c0_61 = arith.constant 0 : index
    %c0_62 = arith.constant 0 : index
    %183 = vector.load %arg4[%c1_60, %c0_61, %c0_62] : memref<2x1x384xf32, #tpu.memory_space<vmem>>, vector<1x1x384xf32>
    %184 = vector.shape_cast %183 : vector<1x1x384xf32> to vector<1x384xf32>
    %185 = vector.broadcast %184 : vector<1x384xf32> to vector<16x384xf32>
    %186 = arith.addf %182, %185 : vector<16x384xf32>
    %187 = vector.extract_strided_slice %186 {offsets = [0, 0], sizes = [16, 32], strides = [1, 1]} : vector<16x384xf32> to vector<16x32xf32>
    %188 = vector.extract_strided_slice %186 {offsets = [0, 32], sizes = [16, 32], strides = [1, 1]} : vector<16x384xf32> to vector<16x32xf32>
    %189 = vector.extract_strided_slice %186 {offsets = [0, 64], sizes = [16, 32], strides = [1, 1]} : vector<16x384xf32> to vector<16x32xf32>
    %190 = vector.extract_strided_slice %186 {offsets = [0, 96], sizes = [16, 32], strides = [1, 1]} : vector<16x384xf32> to vector<16x32xf32>
    %191 = vector.shape_cast %187 : vector<16x32xf32> to vector<1x16x32xf32>
    %192 = vector.shape_cast %188 : vector<16x32xf32> to vector<1x16x32xf32>
    %193 = vector.shape_cast %189 : vector<16x32xf32> to vector<1x16x32xf32>
    %194 = vector.shape_cast %190 : vector<16x32xf32> to vector<1x16x32xf32>
    %195 = tpu.concatenate %191, %192, %193, %194 in 0 : vector<1x16x32xf32>, vector<1x16x32xf32>, vector<1x16x32xf32>, vector<1x16x32xf32> -> vector<4x16x32xf32>
    %cst_63 = arith.constant 0.176776692 : f32
    %196 = vector.broadcast %cst_63 : f32 to vector<4x16x32xf32>
    %197 = arith.mulf %195, %196 : vector<4x16x32xf32>
    %198 = vector.extract_strided_slice %186 {offsets = [0, 128], sizes = [16, 32], strides = [1, 1]} : vector<16x384xf32> to vector<16x32xf32>
    %199 = vector.extract_strided_slice %186 {offsets = [0, 160], sizes = [16, 32], strides = [1, 1]} : vector<16x384xf32> to vector<16x32xf32>
    %200 = vector.extract_strided_slice %186 {offsets = [0, 192], sizes = [16, 32], strides = [1, 1]} : vector<16x384xf32> to vector<16x32xf32>
    %201 = vector.extract_strided_slice %186 {offsets = [0, 224], sizes = [16, 32], strides = [1, 1]} : vector<16x384xf32> to vector<16x32xf32>
    %202 = vector.shape_cast %198 : vector<16x32xf32> to vector<1x16x32xf32>
    %203 = vector.shape_cast %199 : vector<16x32xf32> to vector<1x16x32xf32>
    %204 = vector.shape_cast %200 : vector<16x32xf32> to vector<1x16x32xf32>
    %205 = vector.shape_cast %201 : vector<16x32xf32> to vector<1x16x32xf32>
    %206 = tpu.concatenate %202, %203, %204, %205 in 0 : vector<1x16x32xf32>, vector<1x16x32xf32>, vector<1x16x32xf32>, vector<1x16x32xf32> -> vector<4x16x32xf32>
    %207 = vector.extract_strided_slice %186 {offsets = [0, 256], sizes = [16, 32], strides = [1, 1]} : vector<16x384xf32> to vector<16x32xf32>
    %208 = vector.extract_strided_slice %186 {offsets = [0, 288], sizes = [16, 32], strides = [1, 1]} : vector<16x384xf32> to vector<16x32xf32>
    %209 = vector.extract_strided_slice %186 {offsets = [0, 320], sizes = [16, 32], strides = [1, 1]} : vector<16x384xf32> to vector<16x32xf32>
    %210 = vector.extract_strided_slice %186 {offsets = [0, 352], sizes = [16, 32], strides = [1, 1]} : vector<16x384xf32> to vector<16x32xf32>
    %211 = vector.shape_cast %207 : vector<16x32xf32> to vector<1x16x32xf32>
    %212 = vector.shape_cast %208 : vector<16x32xf32> to vector<1x16x32xf32>
    %213 = vector.shape_cast %209 : vector<16x32xf32> to vector<1x16x32xf32>
    %214 = vector.shape_cast %210 : vector<16x32xf32> to vector<1x16x32xf32>
    %215 = tpu.concatenate %211, %212, %213, %214 in 0 : vector<1x16x32xf32>, vector<1x16x32xf32>, vector<1x16x32xf32>, vector<1x16x32xf32> -> vector<4x16x32xf32>
    %216 = arith.truncf %197 : vector<4x16x32xf32> to vector<4x16x32xbf16>
    %217 = arith.truncf %206 : vector<4x16x32xf32> to vector<4x16x32xbf16>
    "tpu.trace_start"() <{level = 10 : i32, message = "hqd,hkd->hqk"}> : () -> ()
    %cst_64 = arith.constant dense<0.000000e+00> : vector<4x16x16xf32>
    %218 = tpu.matmul %216, %217, %cst_64 {dimension_numbers = #tpu.dot_dimension_numbers<[2], [2], [1], [1], [0, 0, 0, 1, 1, 1], [0], [0]>} : vector<4x16x32xbf16>, vector<4x16x32xbf16>, vector<4x16x16xf32> -> vector<4x16x16xf32>
    "tpu.trace_stop"() : () -> ()
    %219 = arith.addf %218, %0 : vector<4x16x16xf32>
    %cst_65 = arith.constant dense<0xFF800000> : vector<4x16xf32>
    %220 = vector.multi_reduction <maximumf>, %219, %cst_65 [2] : vector<4x16x16xf32> to vector<4x16xf32>
    %221 = vector.shape_cast %220 : vector<4x16xf32> to vector<4x16x1xf32>
    %222 = vector.broadcast %221 : vector<4x16x1xf32> to vector<4x16x16xf32>
    %223 = arith.subf %219, %222 : vector<4x16x16xf32>
    %224 = math.exp %223 : vector<4x16x16xf32>
    %cst_66 = arith.constant dense<0.000000e+00> : vector<4x16xf32>
    %225 = vector.multi_reduction <add>, %224, %cst_66 [2] : vector<4x16x16xf32> to vector<4x16xf32>
    %226 = vector.shape_cast %225 : vector<4x16xf32> to vector<4x16x1xf32>
    %227 = tpu.reciprocal %226 {approx = true} : vector<4x16x1xf32> -> vector<4x16x1xf32>
    %228 = vector.broadcast %227 : vector<4x16x1xf32> to vector<4x16x16xf32>
    %229 = arith.mulf %224, %228 : vector<4x16x16xf32>
    %230 = arith.truncf %229 : vector<4x16x16xf32> to vector<4x16x16xbf16>
    %231 = arith.truncf %215 : vector<4x16x32xf32> to vector<4x16x32xbf16>
    "tpu.trace_start"() <{level = 10 : i32, message = "hqk,hkd->hqd"}> : () -> ()
    %cst_67 = arith.constant dense<0.000000e+00> : vector<4x16x32xf32>
    %232 = tpu.matmul %230, %231, %cst_67 {dimension_numbers = #tpu.dot_dimension_numbers<[2], [1], [1], [2], [0, 0, 0, 1, 1, 2], [0], [0]>} : vector<4x16x16xbf16>, vector<4x16x32xbf16>, vector<4x16x32xf32> -> vector<4x16x32xf32>
    "tpu.trace_stop"() : () -> ()
    %233 = vector.extract_strided_slice %232 {offsets = [0, 0, 0], sizes = [1, 16, 32], strides = [1, 1, 1]} : vector<4x16x32xf32> to vector<1x16x32xf32>
    %234 = vector.shape_cast %233 : vector<1x16x32xf32> to vector<16x32xf32>
    %235 = vector.extract_strided_slice %232 {offsets = [1, 0, 0], sizes = [1, 16, 32], strides = [1, 1, 1]} : vector<4x16x32xf32> to vector<1x16x32xf32>
    %236 = vector.shape_cast %235 : vector<1x16x32xf32> to vector<16x32xf32>
    %237 = vector.extract_strided_slice %232 {offsets = [2, 0, 0], sizes = [1, 16, 32], strides = [1, 1, 1]} : vector<4x16x32xf32> to vector<1x16x32xf32>
    %238 = vector.shape_cast %237 : vector<1x16x32xf32> to vector<16x32xf32>
    %239 = vector.extract_strided_slice %232 {offsets = [3, 0, 0], sizes = [1, 16, 32], strides = [1, 1, 1]} : vector<4x16x32xf32> to vector<1x16x32xf32>
    %240 = vector.shape_cast %239 : vector<1x16x32xf32> to vector<16x32xf32>
    %241 = tpu.concatenate %234, %236, %238, %240 in 1 : vector<16x32xf32>, vector<16x32xf32>, vector<16x32xf32>, vector<16x32xf32> -> vector<16x128xf32>
    %242 = arith.truncf %241 : vector<16x128xf32> to vector<16x128xbf16>
    %c1_68 = arith.constant 1 : index
    %c0_69 = arith.constant 0 : index
    %c0_70 = arith.constant 0 : index
    %243 = vector.load %arg5[%c1_68, %c0_69, %c0_70] : memref<2x128x128xbf16, #tpu.memory_space<vmem>>, vector<1x128x128xbf16>
    %244 = vector.shape_cast %243 : vector<1x128x128xbf16> to vector<128x128xbf16>
    %cst_71 = arith.constant dense<0.000000e+00> : vector<16x128xf32>
    %245 = tpu.matmul %242, %244, %cst_71 {dimension_numbers = #tpu.dot_dimension_numbers<[1], [0], [0], [1], [0, 0, 1, 1], [], []>} : vector<16x128xbf16>, vector<128x128xbf16>, vector<16x128xf32> -> vector<16x128xf32>
    %246 = vector.extract_strided_slice %179 {offsets = [0, 0], sizes = [1, 128], strides = [1, 1]} : vector<6x128xf32> to vector<1x128xf32>
    %247 = vector.broadcast %246 : vector<1x128xf32> to vector<16x128xf32>
    %248 = arith.addf %245, %247 : vector<16x128xf32>
    %249 = arith.addf %248, %176 : vector<16x128xf32>
    %250 = vector.extract_strided_slice %179 {offsets = [1, 0], sizes = [1, 128], strides = [1, 1]} : vector<6x128xf32> to vector<1x128xf32>
    %251 = vector.extract_strided_slice %179 {offsets = [2, 0], sizes = [1, 128], strides = [1, 1]} : vector<6x128xf32> to vector<1x128xf32>
    %cst_72 = arith.constant dense<0.000000e+00> : vector<16xf32>
    %252 = vector.multi_reduction <add>, %249, %cst_72 [1] : vector<16x128xf32> to vector<16xf32>
    %253 = vector.shape_cast %252 : vector<16xf32> to vector<16x1xf32>
    %cst_73 = arith.constant 1.280000e+02 : f32
    %254 = vector.broadcast %cst_73 : f32 to vector<16x1xf32>
    %255 = arith.divf %253, %254 : vector<16x1xf32>
    %256 = vector.broadcast %255 : vector<16x1xf32> to vector<16x128xf32>
    %257 = arith.subf %249, %256 : vector<16x128xf32>
    %258 = arith.mulf %257, %257 : vector<16x128xf32>
    %cst_74 = arith.constant dense<0.000000e+00> : vector<16xf32>
    %259 = vector.multi_reduction <add>, %258, %cst_74 [1] : vector<16x128xf32> to vector<16xf32>
    %260 = vector.shape_cast %259 : vector<16xf32> to vector<16x1xf32>
    %cst_75 = arith.constant 1.280000e+02 : f32
    %261 = vector.broadcast %cst_75 : f32 to vector<16x1xf32>
    %262 = arith.divf %260, %261 : vector<16x1xf32>
    %263 = vector.broadcast %255 : vector<16x1xf32> to vector<16x128xf32>
    %264 = arith.subf %249, %263 : vector<16x128xf32>
    %cst_76 = arith.constant 9.99999974E-6 : f32
    %265 = vector.broadcast %cst_76 : f32 to vector<16x1xf32>
    %266 = arith.addf %262, %265 : vector<16x1xf32>
    %267 = math.rsqrt %266 : vector<16x1xf32>
    %268 = vector.broadcast %267 : vector<16x1xf32> to vector<16x128xf32>
    %269 = arith.mulf %264, %268 : vector<16x128xf32>
    %270 = vector.broadcast %250 : vector<1x128xf32> to vector<16x128xf32>
    %271 = arith.mulf %269, %270 : vector<16x128xf32>
    %272 = vector.broadcast %251 : vector<1x128xf32> to vector<16x128xf32>
    %273 = arith.addf %271, %272 : vector<16x128xf32>
    %274 = arith.truncf %273 : vector<16x128xf32> to vector<16x128xbf16>
    %c1_77 = arith.constant 1 : index
    %c0_78 = arith.constant 0 : index
    %c0_79 = arith.constant 0 : index
    %275 = vector.load %arg7[%c1_77, %c0_78, %c0_79] : memref<2x128x256xbf16, #tpu.memory_space<vmem>>, vector<1x128x256xbf16>
    %276 = vector.shape_cast %275 : vector<1x128x256xbf16> to vector<128x256xbf16>
    %cst_80 = arith.constant dense<0.000000e+00> : vector<16x256xf32>
    %277 = tpu.matmul %274, %276, %cst_80 {dimension_numbers = #tpu.dot_dimension_numbers<[1], [0], [0], [1], [0, 0, 1, 1], [], []>} : vector<16x128xbf16>, vector<128x256xbf16>, vector<16x256xf32> -> vector<16x256xf32>
    %c1_81 = arith.constant 1 : index
    %c0_82 = arith.constant 0 : index
    %c0_83 = arith.constant 0 : index
    %278 = vector.load %arg8[%c1_81, %c0_82, %c0_83] : memref<2x1x256xf32, #tpu.memory_space<vmem>>, vector<1x1x256xf32>
    %279 = vector.shape_cast %278 : vector<1x1x256xf32> to vector<1x256xf32>
    %280 = vector.broadcast %279 : vector<1x256xf32> to vector<16x256xf32>
    %281 = arith.addf %277, %280 : vector<16x256xf32>
    %282 = arith.mulf %281, %281 : vector<16x256xf32>
    %283 = arith.mulf %281, %282 : vector<16x256xf32>
    %cst_84 = arith.constant 4.471500e-02 : f32
    %284 = vector.broadcast %cst_84 : f32 to vector<16x256xf32>
    %285 = arith.mulf %284, %283 : vector<16x256xf32>
    %286 = arith.addf %281, %285 : vector<16x256xf32>
    %cst_85 = arith.constant 0.797884583 : f32
    %287 = vector.broadcast %cst_85 : f32 to vector<16x256xf32>
    %288 = arith.mulf %287, %286 : vector<16x256xf32>
    %289 = math.tanh %288 : vector<16x256xf32>
    %cst_86 = arith.constant 1.000000e+00 : f32
    %290 = vector.broadcast %cst_86 : f32 to vector<16x256xf32>
    %291 = arith.addf %290, %289 : vector<16x256xf32>
    %cst_87 = arith.constant 5.000000e-01 : f32
    %292 = vector.broadcast %cst_87 : f32 to vector<16x256xf32>
    %293 = arith.mulf %292, %291 : vector<16x256xf32>
    %294 = arith.mulf %281, %293 : vector<16x256xf32>
    %295 = arith.truncf %294 : vector<16x256xf32> to vector<16x256xbf16>
    %c1_88 = arith.constant 1 : index
    %c0_89 = arith.constant 0 : index
    %c0_90 = arith.constant 0 : index
    %296 = vector.load %arg9[%c1_88, %c0_89, %c0_90] : memref<2x256x128xbf16, #tpu.memory_space<vmem>>, vector<1x256x128xbf16>
    %297 = vector.shape_cast %296 : vector<1x256x128xbf16> to vector<256x128xbf16>
    %cst_91 = arith.constant dense<0.000000e+00> : vector<16x128xf32>
    %298 = tpu.matmul %295, %297, %cst_91 {dimension_numbers = #tpu.dot_dimension_numbers<[1], [0], [0], [1], [0, 0, 1, 1], [], []>} : vector<16x256xbf16>, vector<256x128xbf16>, vector<16x128xf32> -> vector<16x128xf32>
    %299 = vector.extract_strided_slice %179 {offsets = [3, 0], sizes = [1, 128], strides = [1, 1]} : vector<6x128xf32> to vector<1x128xf32>
    %300 = vector.broadcast %299 : vector<1x128xf32> to vector<16x128xf32>
    %301 = arith.addf %298, %300 : vector<16x128xf32>
    %302 = arith.addf %301, %273 : vector<16x128xf32>
    %303 = vector.extract_strided_slice %179 {offsets = [4, 0], sizes = [1, 128], strides = [1, 1]} : vector<6x128xf32> to vector<1x128xf32>
    %304 = vector.extract_strided_slice %179 {offsets = [5, 0], sizes = [1, 128], strides = [1, 1]} : vector<6x128xf32> to vector<1x128xf32>
    %cst_92 = arith.constant dense<0.000000e+00> : vector<16xf32>
    %305 = vector.multi_reduction <add>, %302, %cst_92 [1] : vector<16x128xf32> to vector<16xf32>
    %306 = vector.shape_cast %305 : vector<16xf32> to vector<16x1xf32>
    %cst_93 = arith.constant 1.280000e+02 : f32
    %307 = vector.broadcast %cst_93 : f32 to vector<16x1xf32>
    %308 = arith.divf %306, %307 : vector<16x1xf32>
    %309 = vector.broadcast %308 : vector<16x1xf32> to vector<16x128xf32>
    %310 = arith.subf %302, %309 : vector<16x128xf32>
    %311 = arith.mulf %310, %310 : vector<16x128xf32>
    %cst_94 = arith.constant dense<0.000000e+00> : vector<16xf32>
    %312 = vector.multi_reduction <add>, %311, %cst_94 [1] : vector<16x128xf32> to vector<16xf32>
    %313 = vector.shape_cast %312 : vector<16xf32> to vector<16x1xf32>
    %cst_95 = arith.constant 1.280000e+02 : f32
    %314 = vector.broadcast %cst_95 : f32 to vector<16x1xf32>
    %315 = arith.divf %313, %314 : vector<16x1xf32>
    %316 = vector.broadcast %308 : vector<16x1xf32> to vector<16x128xf32>
    %317 = arith.subf %302, %316 : vector<16x128xf32>
    %cst_96 = arith.constant 9.99999974E-6 : f32
    %318 = vector.broadcast %cst_96 : f32 to vector<16x1xf32>
    %319 = arith.addf %315, %318 : vector<16x1xf32>
    %320 = math.rsqrt %319 : vector<16x1xf32>
    %321 = vector.broadcast %320 : vector<16x1xf32> to vector<16x128xf32>
    %322 = arith.mulf %317, %321 : vector<16x128xf32>
    %323 = vector.broadcast %303 : vector<1x128xf32> to vector<16x128xf32>
    %324 = arith.mulf %322, %323 : vector<16x128xf32>
    %325 = vector.broadcast %304 : vector<1x128xf32> to vector<16x128xf32>
    %326 = arith.addf %324, %325 : vector<16x128xf32>
    %c0_97 = arith.constant 0 : index
    %c0_98 = arith.constant 0 : index
    %327 = vector.load %arg12[%c0_97, %c0_98] : memref<2x128xf32, #tpu.memory_space<vmem>>, vector<2x128xf32>
    %328 = arith.truncf %326 : vector<16x128xf32> to vector<16x128xbf16>
    %c0_99 = arith.constant 0 : index
    %c0_100 = arith.constant 0 : index
    %329 = vector.load %arg10[%c0_99, %c0_100] : memref<128x64xbf16, #tpu.memory_space<vmem>>, vector<128x64xbf16>
    %cst_101 = arith.constant dense<0.000000e+00> : vector<16x64xf32>
    %330 = tpu.matmul %328, %329, %cst_101 {dimension_numbers = #tpu.dot_dimension_numbers<[1], [0], [0], [1], [0, 0, 1, 1], [], []>} : vector<16x128xbf16>, vector<128x64xbf16>, vector<16x64xf32> -> vector<16x64xf32>
    %331 = vector.extract_strided_slice %327 {offsets = [0, 0], sizes = [1, 64], strides = [1, 1]} : vector<2x128xf32> to vector<1x64xf32>
    %332 = vector.broadcast %331 : vector<1x64xf32> to vector<16x64xf32>
    %333 = arith.addf %330, %332 : vector<16x64xf32>
    %cst_102 = arith.constant 0.000000e+00 : f32
    %334 = vector.broadcast %cst_102 : f32 to vector<16x64xf32>
    %335 = arith.maximumf %333, %334 : vector<16x64xf32>
    %336 = arith.truncf %335 : vector<16x64xf32> to vector<16x64xbf16>
    %c0_103 = arith.constant 0 : index
    %c0_104 = arith.constant 0 : index
    %337 = vector.load %arg11[%c0_103, %c0_104] : memref<64x128xbf16, #tpu.memory_space<vmem>>, vector<64x128xbf16>
    %cst_105 = arith.constant dense<0.000000e+00> : vector<16x128xf32>
    %338 = tpu.matmul %336, %337, %cst_105 {dimension_numbers = #tpu.dot_dimension_numbers<[1], [0], [0], [1], [0, 0, 1, 1], [], []>} : vector<16x64xbf16>, vector<64x128xbf16>, vector<16x128xf32> -> vector<16x128xf32>
    %339 = vector.extract_strided_slice %327 {offsets = [1, 0], sizes = [1, 128], strides = [1, 1]} : vector<2x128xf32> to vector<1x128xf32>
    %340 = vector.broadcast %339 : vector<1x128xf32> to vector<16x128xf32>
    %341 = arith.addf %338, %340 : vector<16x128xf32>
    %c0_106 = arith.constant 0 : index
    %c0_107 = arith.constant 0 : index
    %342 = vector.load %arg13[%c0_106, %c0_107] : memref<16x128xf32, #tpu.memory_space<vmem>>, vector<16x128xf32>
    tpu.vector_store %arg13[%c0_106, %c0_107], %341 {strides = array<i32>} : memref<16x128xf32, #tpu.memory_space<vmem>>, vector<16x128xf32>,
    return
  }
}

</mosaic_0001>

<llo_original>
// kernel: roberta_classifier_forward.1
$region0: #{roberta_classifier_forward.1}
  #allocation0 [shape = 'u32[]', space=smem, size = 0x4, offset = 0x4, fixed_abs, tag = 'smem constant byte address 0x4 - core index']
  #allocation1 [shape = 'u32[72,128]{1,0:T(1,128)}', space=vmem, size = 0x9000, scoped, tag = 'internal scratch']
  %s0 = inlined_call_operand.vmem [shape: f32[16,128], index: 0, kind: input, shape index: {}]
  %s1 = inlined_call_operand.vmem [shape: f32[4,16,16], index: 1, kind: input, shape index: {}]
  %s2 = inlined_call_operand.vmem [shape: f32[2,128], index: 2, kind: input, shape index: {}]
  %s3 = inlined_call_operand.hbm [shape: bf16[2,128,384], index: 3, kind: input, shape index: {}]
  %s4 = inlined_call_operand.vmem [shape: f32[2,1,384], index: 4, kind: input, shape index: {}]
  %s5 = inlined_call_operand.vmem [shape: bf16[2,128,128], index: 5, kind: input, shape index: {}]
  %s6 = inlined_call_operand.vmem [shape: f32[2,6,128], index: 6, kind: input, shape index: {}]
  %s7 = inlined_call_operand.vmem [shape: bf16[2,128,256], index: 7, kind: input, shape index: {}]
  %s8 = inlined_call_operand.vmem [shape: f32[2,1,256], index: 8, kind: input, shape index: {}]
  %s9 = inlined_call_operand.hbm [shape: bf16[2,256,128], index: 9, kind: input, shape index: {}]
  %s10 = inlined_call_operand.vmem [shape: bf16[128,64], index: 10, kind: input, shape index: {}]
  %s11 = inlined_call_operand.vmem [shape: bf16[64,128], index: 11, kind: input, shape index: {}]
  %s12 = inlined_call_operand.vmem [shape: f32[2,128], index: 12, kind: input, shape index: {}]
  %s13 = inlined_call_operand.vmem [shape: f32[16,128], index: 13, kind: output, shape index: {}]
  %s14 = sld [smem:[#allocation0]]
  $region70: #{roberta_classifier_forward.1} parent=0
    _
  %s16 = ssub.s32 1, %s14
  %s17 = scalar_select 0, %s16, %s14
  $region1: #{roberta_classifier_forward.1} parent=0
    #allocation2 [shape = 'u8[196608]{0}', space=vmem, size = 0x30000, scoped, tag = 'input window, operand 3, single buffered']
    #allocation3 [shape = 's32[1]{0}', space=sflag, size = 0x4, scoped, tag = 'scoped memory for roberta_classifier_forward.1']
    #allocation4 [shape = 'u8[131072]{0}', space=vmem, size = 0x20000, scoped, tag = 'input window, operand 9, single buffered']
    #allocation5 [shape = 's32[1]{0}', space=sflag, size = 0x4, scoped, tag = 'scoped memory for roberta_classifier_forward.1']
    %18 = vsyncpa [#allocation3], 0
    %19 = vsyncpa [#allocation5], 0
    // Predicated region
    $region2: #{roberta_classifier_forward.1} parent=1 // pred_check
      _
    $region3: #{roberta_classifier_forward.1} parent=1 // pred_check_branch
      %21 = sbr.rel (0) target = $region5
    $region4: #{roberta_classifier_forward.1} parent=1 // pred_region
      _
    $region5: #{roberta_classifier_forward.1} parent=1 // pred_fallthru
      _
    // Predicated region
    $region6: #{roberta_classifier_forward.1} parent=1 // pred_check
      _
    $region7: #{roberta_classifier_forward.1} parent=1 // pred_check_branch
      %23 = sbr.rel (0) target = $region9
    $region8: #{roberta_classifier_forward.1} parent=1 // pred_region
      _
    $region9: #{roberta_classifier_forward.1} parent=1 // pred_fallthru
      _
    // Predicated region
    $region10: #{roberta_classifier_forward.1} parent=1 // pred_check
      _
    $region11: #{roberta_classifier_forward.1} parent=1 // pred_check_branch
      %25 = sbr.rel (0) target = $region13
    $region12: #{roberta_classifier_forward.1} parent=1 // pred_region
      _
    $region13: #{roberta_classifier_forward.1} parent=1 // pred_fallthru
      _
    // Predicated region
    $region14: #{roberta_classifier_forward.1} parent=1 // pred_check
      _
    $region15: #{roberta_classifier_forward.1} parent=1 // pred_check_branch
      %27 = sbr.rel (0) target = $region17
    $region16: #{roberta_classifier_forward.1} parent=1 // pred_region
      %29 = vsyncadd [#allocation3], 0
      %s30 = sshll.u32 %s3, 4
      %s31 = int_to_ptr.hbm [resolvable:$true] %s30
      %s32 = sshll.u32 [#allocation2], 4
      %s33 = int_to_ptr.vmem [resolvable:$true] %s32
      %38 = dma.hbm_to_vmem [thread:$0]  %s31, 6144, %s33, [#allocation3], 192, 192, 12
    $region17: #{roberta_classifier_forward.1} parent=1 // pred_fallthru
      _
    // Predicated region
    $region18: #{roberta_classifier_forward.1} parent=1 // pred_check
      _
    $region19: #{roberta_classifier_forward.1} parent=1 // pred_check_branch
      %40 = sbr.rel (0) target = $region21
    $region20: #{roberta_classifier_forward.1} parent=1 // pred_region
      _
    $region21: #{roberta_classifier_forward.1} parent=1 // pred_fallthru
      _
    // Predicated region
    $region22: #{roberta_classifier_forward.1} parent=1 // pred_check
      _
    $region23: #{roberta_classifier_forward.1} parent=1 // pred_check_branch
      %42 = sbr.rel (0) target = $region25
    $region24: #{roberta_classifier_forward.1} parent=1 // pred_region
      _
    $region25: #{roberta_classifier_forward.1} parent=1 // pred_fallthru
      _
    // Predicated region
    $region26: #{roberta_classifier_forward.1} parent=1 // pred_check
      _
    $region27: #{roberta_classifier_forward.1} parent=1 // pred_check_branch
      %44 = sbr.rel (0) target = $region29
    $region28: #{roberta_classifier_forward.1} parent=1 // pred_region
      _
    $region29: #{roberta_classifier_forward.1} parent=1 // pred_fallthru
      _
    // Predicated region
    $region30: #{roberta_classifier_forward.1} parent=1 // pred_check
      _
    $region31: #{roberta_classifier_forward.1} parent=1 // pred_check_branch
      %46 = sbr.rel (0) target = $region33
    $region32: #{roberta_classifier_forward.1} parent=1 // pred_region
      _
    $region33: #{roberta_classifier_forward.1} parent=1 // pred_fallthru
      _
    // Predicated region
    $region34: #{roberta_classifier_forward.1} parent=1 // pred_check
      _
    $region35: #{roberta_classifier_forward.1} parent=1 // pred_check_branch
      %48 = sbr.rel (0) target = $region37
    $region36: #{roberta_classifier_forward.1} parent=1 // pred_region
      _
    $region37: #{roberta_classifier_forward.1} parent=1 // pred_fallthru
      _
    // Predicated region
    $region38: #{roberta_classifier_forward.1} parent=1 // pred_check
      _
    $region39: #{roberta_classifier_forward.1} parent=1 // pred_check_branch
      %50 = sbr.rel (0) target = $region41
    $region40: #{roberta_classifier_forward.1} parent=1 // pred_region
      %52 = vsyncadd [#allocation5], 0
      %s53 = sshll.u32 %s9, 4
      %s54 = int_to_ptr.hbm [resolvable:$true] %s53
      %s55 = sshll.u32 [#allocation4], 4
      %s56 = int_to_ptr.vmem [resolvable:$true] %s55
      %61 = dma.hbm_to_vmem [thread:$0]  %s54, 4096, %s56, [#allocation5], 64, 64, 4
    $region41: #{roberta_classifier_forward.1} parent=1 // pred_fallthru
      _
    // Predicated region
    $region42: #{roberta_classifier_forward.1} parent=1 // pred_check
      _
    $region43: #{roberta_classifier_forward.1} parent=1 // pred_check_branch
      %63 = sbr.rel (0) target = $region45
    $region44: #{roberta_classifier_forward.1} parent=1 // pred_region
      _
    $region45: #{roberta_classifier_forward.1} parent=1 // pred_fallthru
      _
    // Predicated region
    $region46: #{roberta_classifier_forward.1} parent=1 // pred_check
      _
    $region47: #{roberta_classifier_forward.1} parent=1 // pred_check_branch
      %65 = sbr.rel (0) target = $region49
    $region48: #{roberta_classifier_forward.1} parent=1 // pred_region
      _
    $region49: #{roberta_classifier_forward.1} parent=1 // pred_fallthru
      _
    // Predicated region
    $region50: #{roberta_classifier_forward.1} parent=1 // pred_check
      _
    $region51: #{roberta_classifier_forward.1} parent=1 // pred_check_branch
      %67 = sbr.rel (0) target = $region53
    $region52: #{roberta_classifier_forward.1} parent=1 // pred_region
      _
    $region53: #{roberta_classifier_forward.1} parent=1 // pred_fallthru
      _
    // Predicated region
    $region54: #{roberta_classifier_forward.1} parent=1 // pred_check
      _
    $region55: #{roberta_classifier_forward.1} parent=1 // pred_check_branch
      %69 = sbr.rel (0) target = $region57
    $region56: #{roberta_classifier_forward.1} parent=1 // pred_region
      %71 = dma.done [#allocation3], 6144
    $region57: #{roberta_classifier_forward.1} parent=1 // pred_fallthru
      _
    // Predicated region
    $region58: #{roberta_classifier_forward.1} parent=1 // pred_check
      _
    $region59: #{roberta_classifier_forward.1} parent=1 // pred_check_branch
      %73 = sbr.rel (0) target = $region61
    $region60: #{roberta_classifier_forward.1} parent=1 // pred_region
      %75 = dma.done [#allocation5], 4096
    $region61: #{roberta_classifier_forward.1} parent=1 // pred_fallthru
      _
    %v77 = vld [vmem:[%s1] sm:$0xff]
    %v78 = vld [vmem:[%s1 + $0x8] sm:$0xff]
    %v79 = vld [vmem:[%s1 + $0x10] sm:$0xff]
    %v80 = vld [vmem:[%s1 + $0x18] sm:$0xff]
    %v81 = vld [vmem:[%s1 + $0x20] sm:$0xff]
    %v82 = vld [vmem:[%s1 + $0x28] sm:$0xff]
    %v83 = vld [vmem:[%s1 + $0x30] sm:$0xff]
    %v84 = vld [vmem:[%s1 + $0x38] sm:$0xff]
    %v85 = vld [vmem:[%s2] sm:$0x3]
    %v86 = vld [vmem:[%s0] sm:$0xff]
    %v87 = vld [vmem:[%s0 + $0x8] sm:$0xff]
    %88 = vadd.xlane.f32.xlu0 %v86
    %v89 = vpop.xlane.xlu0 %88
    %90 = vadd.xlane.f32.xlu0 %v87
    %v91 = vpop.xlane.xlu0 %90
    %v92 = vrcp.pop 128.0
    %v93 = vmul.f32 128.0, %v92
    %v94 = vsub.f32 1.0, %v93
    %v95 = vmul.f32 %v92, %v94
    %v96 = vadd.f32 %v92, %v95
    %vm97 = vweird.f32 %v92
    %v98 = vsel %vm97, %v92, %v96
    %v99 = vmul.f32 %v89, %v98
    %v100 = vmul.f32 %v91, %v98
    %v101 = vsub.f32 %v86, %v99
    %v102 = vsub.f32 %v87, %v100
    %v103 = vmul.f32 %v101, %v101
    %v104 = vmul.f32 %v102, %v102
    %105 = vadd.xlane.f32.xlu0 %v103
    %v106 = vpop.xlane.xlu0 %105
    %107 = vadd.xlane.f32.xlu0 %v104
    %v108 = vpop.xlane.xlu0 %107
    %v109 = vmul.f32 %v106, %v98
    %v110 = vmul.f32 %v108, %v98
    %v111 = vadd.f32 %v109, 1e-05
    %v112 = vadd.f32 %v110, 1e-05
    %v113 = vrsqrt.pop %v111
    %v114 = vmul.f32 %v113, %v111
    %v115 = vmul.f32 %v114, %v113
    %v116 = vmul.f32 0.5, %v115
    %v117 = vsub.f32 1.5, %v116
    %v118 = vmul.f32 %v113, %v117
    %vm119 = vweird.f32 %v111
    %vm120 = vweird.f32 %v113
    %vm121 = vmor %vm119, %vm120
    %v122 = vsel %vm121, %v113, %v118
    %v123 = vrsqrt.pop %v112
    %v124 = vmul.f32 %v123, %v112
    %v125 = vmul.f32 %v124, %v123
    %v126 = vmul.f32 0.5, %v125
    %v127 = vsub.f32 1.5, %v126
    %v128 = vmul.f32 %v123, %v127
    %vm129 = vweird.f32 %v112
    %vm130 = vweird.f32 %v123
    %vm131 = vmor %vm129, %vm130
    %v132 = vsel %vm131, %v123, %v128
    %v133 = vmul.f32 %v101, %v122
    %v134 = vmul.f32 %v102, %v132
    %v135 = vperm.slane %v85, 0
    %v136 = vmul.f32 %v133, %v135
    %v137 = vmul.f32 %v134, %v135
    %v138 = vperm.slane %v85, 1
    %v139 = vadd.f32 %v136, %v138
    %v140 = vadd.f32 %v137, %v138
    %v141 = vpack.c.bf16 %v140, %v139
    %v142 = vld [vmem:[%s6] sm:$0x3f]
    %v143 = vld [vmem:[#allocation2] sm:$0xff]
    %v144 = vld [vmem:[#allocation2 + $0x8] sm:$0xf]
    %v145 = vld [vmem:[#allocation2 + $0xc] sm:$0xff]
    %v146 = vld [vmem:[#allocation2 + $0x14] sm:$0xf]
    %v147 = vld [vmem:[#allocation2 + $0x18] sm:$0xff]
    %v148 = vld [vmem:[#allocation2 + $0x20] sm:$0xf]
    %v149 = vld [vmem:[#allocation2 + $0x24] sm:$0xff]
    %v150 = vld [vmem:[#allocation2 + $0x2c] sm:$0xf]
    %v151 = vld [vmem:[#allocation2 + $0x30] sm:$0xff]
    %v152 = vld [vmem:[#allocation2 + $0x38] sm:$0xf]
    %v153 = vld [vmem:[#allocation2 + $0x3c] sm:$0xff]
    %v154 = vld [vmem:[#allocation2 + $0x44] sm:$0xf]
    %v155 = vld [vmem:[#allocation2 + $0x48] sm:$0xff]
    %v156 = vld [vmem:[#allocation2 + $0x50] sm:$0xf]
    %v157 = vld [vmem:[#allocation2 + $0x54] sm:$0xff]
    %v158 = vld [vmem:[#allocation2 + $0x5c] sm:$0xf]
    %v159 = vld [vmem:[#allocation2 + $0x60] sm:$0xff]
    %v160 = vld [vmem:[#allocation2 + $0x68] sm:$0xf]
    %v161 = vld [vmem:[#allocation2 + $0x6c] sm:$0xff]
    %v162 = vld [vmem:[#allocation2 + $0x74] sm:$0xf]
    %v163 = vld [vmem:[#allocation2 + $0x78] sm:$0xff]
    %v164 = vld [vmem:[#allocation2 + $0x80] sm:$0xf]
    %v165 = vld [vmem:[#allocation2 + $0x84] sm:$0xff]
    %v166 = vld [vmem:[#allocation2 + $0x8c] sm:$0xf]
    %v167 = vld [vmem:[#allocation2 + $0x90] sm:$0xff]
    %v168 = vld [vmem:[#allocation2 + $0x98] sm:$0xf]
    %v169 = vld [vmem:[#allocation2 + $0x9c] sm:$0xff]
    %v170 = vld [vmem:[#allocation2 + $0xa4] sm:$0xf]
    %v171 = vld [vmem:[#allocation2 + $0xa8] sm:$0xff]
    %v172 = vld [vmem:[#allocation2 + $0xb0] sm:$0xf]
    %v173 = vld [vmem:[#allocation2 + $0xb4] sm:$0xff]
    %v174 = vld [vmem:[#allocation2 + $0xbc] sm:$0xf]
    %v175 = vld [vmem:[%s4] sm:$0x7]
    %v177 = vperm.slane %v175, 0
    %v178 = vperm.slane %v175, 1
    %v179 = vperm.slane %v175, 2
    %v215 = vunpack.c.l.b16 %v143
    %v216 = vunpack.c.h.b16 %v143
    %v217 = vunpack.c.l.b16 %v144
    %v218 = vunpack.c.l.b16 %v145
    %v219 = vunpack.c.h.b16 %v145
    %v220 = vunpack.c.l.b16 %v146
    %v221 = vunpack.c.l.b16 %v147
    %v222 = vunpack.c.h.b16 %v147
    %v223 = vunpack.c.l.b16 %v148
    %v224 = vunpack.c.l.b16 %v149
    %v225 = vunpack.c.h.b16 %v149
    %v226 = vunpack.c.l.b16 %v150
    %v227 = vunpack.c.l.b16 %v151
    %v228 = vunpack.c.h.b16 %v151
    %v229 = vunpack.c.l.b16 %v152
    %v230 = vunpack.c.l.b16 %v153
    %v231 = vunpack.c.h.b16 %v153
    %v232 = vunpack.c.l.b16 %v154
    %v233 = vunpack.c.l.b16 %v155
    %v234 = vunpack.c.h.b16 %v155
    %v235 = vunpack.c.l.b16 %v156
    %v236 = vunpack.c.l.b16 %v157
    %v237 = vunpack.c.h.b16 %v157
    %v238 = vunpack.c.l.b16 %v158
    %v239 = vunpack.c.l.b16 %v159
    %v240 = vunpack.c.h.b16 %v159
    %v241 = vunpack.c.l.b16 %v160
    %v242 = vunpack.c.l.b16 %v161
    %v243 = vunpack.c.h.b16 %v161
    %v244 = vunpack.c.l.b16 %v162
    %v245 = vunpack.c.l.b16 %v163
    %v246 = vunpack.c.h.b16 %v163
    %v247 = vunpack.c.l.b16 %v164
    %v248 = vunpack.c.l.b16 %v165
    %v249 = vunpack.c.h.b16 %v165
    %v250 = vunpack.c.l.b16 %v166
    %v251 = vunpack.c.l.b16 %v167
    %v252 = vunpack.c.h.b16 %v167
    %v253 = vunpack.c.l.b16 %v168
    %v254 = vunpack.c.l.b16 %v169
    %v255 = vunpack.c.h.b16 %v169
    %v256 = vunpack.c.l.b16 %v170
    %v257 = vunpack.c.l.b16 %v171
    %v258 = vunpack.c.h.b16 %v171
    %v259 = vunpack.c.l.b16 %v172
    %v260 = vunpack.c.l.b16 %v173
    %v261 = vunpack.c.h.b16 %v173
    %v262 = vunpack.c.l.b16 %v174
    %v263 = vpack.c.b16 %v218, %v215
    %v264 = vpack.c.b16 %v219, %v216
    %v265 = vpack.c.b16 %v220, %v217
    %v266 = vpack.c.b16 %v224, %v221
    %v267 = vpack.c.b16 %v225, %v222
    %v268 = vpack.c.b16 %v226, %v223
    %v269 = vpack.c.b16 %v230, %v227
    %v270 = vpack.c.b16 %v231, %v228
    %v271 = vpack.c.b16 %v232, %v229
    %v272 = vpack.c.b16 %v236, %v233
    %v273 = vpack.c.b16 %v237, %v234
    %v274 = vpack.c.b16 %v238, %v235
    %v275 = vpack.c.b16 %v242, %v239
    %v276 = vpack.c.b16 %v243, %v240
    %v277 = vpack.c.b16 %v244, %v241
    %v278 = vpack.c.b16 %v248, %v245
    %v279 = vpack.c.b16 %v249, %v246
    %v280 = vpack.c.b16 %v250, %v247
    %v281 = vpack.c.b16 %v254, %v251
    %v282 = vpack.c.b16 %v255, %v252
    %v283 = vpack.c.b16 %v256, %v253
    %v284 = vpack.c.b16 %v260, %v257
    %v285 = vpack.c.b16 %v261, %v258
    %v286 = vpack.c.b16 %v262, %v259
    %311 = vmatpush.bf16.msra.mxu0 %v284
    %312 = vmatpush.bf16.msra.mxu0 %v281
    %313 = vmatpush.bf16.msra.mxu0 %v278
    %314 = vmatpush.bf16.msra.mxu0 %v275
    %315 = vmatpush.bf16.msra.mxu0 %v272
    %316 = vmatpush.bf16.msra.mxu0 %v269
    %317 = vmatpush.bf16.msra.mxu0 %v266
    %318 = vmatpush.bf16.msra.mxu0 %v263
    %319 = vmatmul.bf16.gmra.mxu0 %v141
    %v320 = vpop.f32.mrf.mxu0
    %v321 = vadd.f32 %v177, %v320
    %v322 = vpop.f32.mrf.mxu0
    %v323 = vadd.f32 %v177, %v322
    %324 = vdwg.mxu0
    %325 = vmatpush.bf16.msra.mxu0 %v285
    %326 = vmatpush.bf16.msra.mxu0 %v282
    %327 = vmatpush.bf16.msra.mxu0 %v279
    %328 = vmatpush.bf16.msra.mxu0 %v276
    %329 = vmatpush.bf16.msra.mxu0 %v273
    %330 = vmatpush.bf16.msra.mxu0 %v270
    %331 = vmatpush.bf16.msra.mxu0 %v267
    %332 = vmatpush.bf16.msra.mxu0 %v264
    %333 = vmatmul.bf16.gmra.mxu0 %v141
    %v334 = vpop.f32.mrf.mxu0
    %v335 = vadd.f32 %v178, %v334
    %v336 = vpop.f32.mrf.mxu0
    %v337 = vadd.f32 %v178, %v336
    %338 = vdwg.mxu0
    %339 = vmatpush.bf16.msra.mxu0 %v286
    %340 = vmatpush.bf16.msra.mxu0 %v283
    %341 = vmatpush.bf16.msra.mxu0 %v280
    %342 = vmatpush.bf16.msra.mxu0 %v277
    %343 = vmatpush.bf16.msra.mxu0 %v274
    %344 = vmatpush.bf16.msra.mxu0 %v271
    %345 = vmatpush.bf16.msra.mxu0 %v268
    %346 = vmatpush.bf16.msra.mxu0 %v265
    %347 = vmatmul.bf16.gmra.mxu0 %v141
    %v348 = vpop.f32.mrf.mxu0
    %v349 = vadd.f32 %v179, %v348
    %v350 = vpop.f32.mrf.mxu0
    %v351 = vadd.f32 %v179, %v350
    %352 = vdwg.mxu0
    %355 = vrot.lane.b32.xlu0 %v321, 96
    %v356 = vpop.permute.xlu0 %355
    %357 = vrot.lane.b32.xlu0 %v323, 96
    %v358 = vpop.permute.xlu0 %357
    %361 = vrot.lane.b32.xlu0 %v321, 64
    %v362 = vpop.permute.xlu0 %361
    %363 = vrot.lane.b32.xlu0 %v323, 64
    %v364 = vpop.permute.xlu0 %363
    %367 = vrot.lane.b32.xlu0 %v321, 32
    %v368 = vpop.permute.xlu0 %367
    %369 = vrot.lane.b32.xlu0 %v323, 32
    %v370 = vpop.permute.xlu0 %369
    %v373 = vmul.f32 %v321, 0.17677669
    %v374 = vmul.f32 %v323, 0.17677669
    %v375 = vmul.f32 %v356, 0.17677669
    %v376 = vmul.f32 %v358, 0.17677669
    %v377 = vmul.f32 %v362, 0.17677669
    %v378 = vmul.f32 %v364, 0.17677669
    %v379 = vmul.f32 %v368, 0.17677669
    %v380 = vmul.f32 %v370, 0.17677669
    %383 = vrot.lane.b32.xlu0 %v335, 96
    %v384 = vpop.permute.xlu0 %383
    %385 = vrot.lane.b32.xlu0 %v337, 96
    %v386 = vpop.permute.xlu0 %385
    %389 = vrot.lane.b32.xlu0 %v335, 64
    %v390 = vpop.permute.xlu0 %389
    %391 = vrot.lane.b32.xlu0 %v337, 64
    %v392 = vpop.permute.xlu0 %391
    %395 = vrot.lane.b32.xlu0 %v335, 32
    %v396 = vpop.permute.xlu0 %395
    %397 = vrot.lane.b32.xlu0 %v337, 32
    %v398 = vpop.permute.xlu0 %397
    %403 = vrot.lane.b32.xlu0 %v349, 96
    %v404 = vpop.permute.xlu0 %403
    %405 = vrot.lane.b32.xlu0 %v351, 96
    %v406 = vpop.permute.xlu0 %405
    %409 = vrot.lane.b32.xlu0 %v349, 64
    %v410 = vpop.permute.xlu0 %409
    %411 = vrot.lane.b32.xlu0 %v351, 64
    %v412 = vpop.permute.xlu0 %411
    %415 = vrot.lane.b32.xlu0 %v349, 32
    %v416 = vpop.permute.xlu0 %415
    %417 = vrot.lane.b32.xlu0 %v351, 32
    %v418 = vpop.permute.xlu0 %417
    %v421 = vpack.c.bf16 %v373, %v373
    %v422 = vpack.c.bf16 %v374, %v374
    %v423 = vpack.c.bf16 %v375, %v375
    %v424 = vpack.c.bf16 %v376, %v376
    %v425 = vpack.c.bf16 %v377, %v377
    %v426 = vpack.c.bf16 %v378, %v378
    %v427 = vpack.c.bf16 %v379, %v379
    %v428 = vpack.c.bf16 %v380, %v380
    %v429 = vpack.c.bf16 %v335, %v335
    %v430 = vpack.c.bf16 %v337, %v337
    %v431 = vpack.c.bf16 %v384, %v384
    %v432 = vpack.c.bf16 %v386, %v386
    %v433 = vpack.c.bf16 %v390, %v390
    %v434 = vpack.c.bf16 %v392, %v392
    %v435 = vpack.c.bf16 %v396, %v396
    %v436 = vpack.c.bf16 %v398, %v398
    %v439 = vunpack.c.l.b16 %v421
    %v440 = vunpack.c.l.b16 %v422
    %v441 = vpack.c.b16 %v440, %v439
    %v444 = vunpack.c.l.b16 %v429
    %v445 = vunpack.c.l.b16 %v430
    %v446 = vpack.c.b16 %v445, %v444
    %vm447 = vcmask 261120
    %v449 = vsel %vm447, %v441, 0
    %v452 = vsel %vm447, %v446, 0
    %454 = vmatpush.bf16.xpose.msra.mxu0 0
    %455 = vmatpush.bf16.xpose.msra.mxu0 0
    %456 = vmatpush.bf16.xpose.msra.mxu0 0
    %457 = vmatpush.bf16.xpose.msra.mxu0 0
    %458 = vmatpush.bf16.xpose.msra.mxu0 0
    %459 = vmatpush.bf16.xpose.msra.mxu0 0
    %460 = vmatpush.bf16.xpose.msra.mxu0 0
    %461 = vmatpush.bf16.xpose.msra.mxu0 %v452
    %462 = vmatmul.bf16.gmra.mxu0 %v449
    %v463 = vpop.f32.mrf.mxu0
    %v464 = vadd.f32 %v77, %v463
    %v465 = vpop.f32.mrf.mxu0
    %v466 = vadd.f32 %v78, %v465
    %467 = vdwg.mxu0
    %v470 = vunpack.c.l.b16 %v423
    %v471 = vunpack.c.l.b16 %v424
    %v472 = vpack.c.b16 %v471, %v470
    %v475 = vunpack.c.l.b16 %v431
    %v476 = vunpack.c.l.b16 %v432
    %v477 = vpack.c.b16 %v476, %v475
    %v479 = vsel %vm447, %v472, 0
    %v482 = vsel %vm447, %v477, 0
    %484 = vmatpush.bf16.xpose.msra.mxu0 0
    %485 = vmatpush.bf16.xpose.msra.mxu0 0
    %486 = vmatpush.bf16.xpose.msra.mxu0 0
    %487 = vmatpush.bf16.xpose.msra.mxu0 0
    %488 = vmatpush.bf16.xpose.msra.mxu0 0
    %489 = vmatpush.bf16.xpose.msra.mxu0 0
    %490 = vmatpush.bf16.xpose.msra.mxu0 0
    %491 = vmatpush.bf16.xpose.msra.mxu0 %v482
    %492 = vmatmul.bf16.gmra.mxu0 %v479
    %v493 = vpop.f32.mrf.mxu0
    %v494 = vadd.f32 %v79, %v493
    %v495 = vpop.f32.mrf.mxu0
    %v496 = vadd.f32 %v80, %v495
    %497 = vdwg.mxu0
    %v500 = vunpack.c.l.b16 %v425
    %v501 = vunpack.c.l.b16 %v426
    %v502 = vpack.c.b16 %v501, %v500
    %v505 = vunpack.c.l.b16 %v433
    %v506 = vunpack.c.l.b16 %v434
    %v507 = vpack.c.b16 %v506, %v505
    %v509 = vsel %vm447, %v502, 0
    %v512 = vsel %vm447, %v507, 0
    %514 = vmatpush.bf16.xpose.msra.mxu0 0
    %515 = vmatpush.bf16.xpose.msra.mxu0 0
    %516 = vmatpush.bf16.xpose.msra.mxu0 0
    %517 = vmatpush.bf16.xpose.msra.mxu0 0
    %518 = vmatpush.bf16.xpose.msra.mxu0 0
    %519 = vmatpush.bf16.xpose.msra.mxu0 0
    %520 = vmatpush.bf16.xpose.msra.mxu0 0
    %521 = vmatpush.bf16.xpose.msra.mxu0 %v512
    %522 = vmatmul.bf16.gmra.mxu0 %v509
    %v523 = vpop.f32.mrf.mxu0
    %v524 = vadd.f32 %v81, %v523
    %v525 = vpop.f32.mrf.mxu0
    %v526 = vadd.f32 %v82, %v525
    %527 = vdwg.mxu0
    %v530 = vunpack.c.l.b16 %v427
    %v531 = vunpack.c.l.b16 %v428
    %v532 = vpack.c.b16 %v531, %v530
    %v535 = vunpack.c.l.b16 %v435
    %v536 = vunpack.c.l.b16 %v436
    %v537 = vpack.c.b16 %v536, %v535
    %v539 = vsel %vm447, %v532, 0
    %v542 = vsel %vm447, %v537, 0
    %544 = vmatpush.bf16.xpose.msra.mxu0 0
    %545 = vmatpush.bf16.xpose.msra.mxu0 0
    %546 = vmatpush.bf16.xpose.msra.mxu0 0
    %547 = vmatpush.bf16.xpose.msra.mxu0 0
    %548 = vmatpush.bf16.xpose.msra.mxu0 0
    %549 = vmatpush.bf16.xpose.msra.mxu0 0
    %550 = vmatpush.bf16.xpose.msra.mxu0 0
    %551 = vmatpush.bf16.xpose.msra.mxu0 %v542
    %552 = vmatmul.bf16.gmra.mxu0 %v539
    %v553 = vpop.f32.mrf.mxu0
    %v554 = vadd.f32 %v83, %v553
    %v555 = vpop.f32.mrf.mxu0
    %v556 = vadd.f32 %v84, %v555
    %557 = vdwg.mxu0
    %vm558 = vcmask 130048
    %v559 = vsel %vm558, %v464, -inf
    %560 = vmax.xlane.f32.xlu0 %v559
    %v561 = vpop.xlane.xlu0 %560
    %v562 = vsel %vm558, %v466, -inf
    %563 = vmax.xlane.f32.xlu0 %v562
    %v564 = vpop.xlane.xlu0 %563
    %v565 = vsel %vm558, %v494, -inf
    %566 = vmax.xlane.f32.xlu0 %v565
    %v567 = vpop.xlane.xlu0 %566
    %v568 = vsel %vm558, %v496, -inf
    %569 = vmax.xlane.f32.xlu0 %v568
    %v570 = vpop.xlane.xlu0 %569
    %v571 = vsel %vm558, %v524, -inf
    %572 = vmax.xlane.f32.xlu0 %v571
    %v573 = vpop.xlane.xlu0 %572
    %v574 = vsel %vm558, %v526, -inf
    %575 = vmax.xlane.f32.xlu0 %v574
    %v576 = vpop.xlane.xlu0 %575
    %v577 = vsel %vm558, %v554, -inf
    %578 = vmax.xlane.f32.xlu0 %v577
    %v579 = vpop.xlane.xlu0 %578
    %v580 = vsel %vm558, %v556, -inf
    %581 = vmax.xlane.f32.xlu0 %v580
    %v582 = vpop.xlane.xlu0 %581
    %v583 = vsub.f32 %v464, %v561
    %v584 = vsub.f32 %v466, %v564
    %v585 = vsub.f32 %v494, %v567
    %v586 = vsub.f32 %v496, %v570
    %v587 = vsub.f32 %v524, %v573
    %v588 = vsub.f32 %v526, %v576
    %v589 = vsub.f32 %v554, %v579
    %v590 = vsub.f32 %v556, %v582
    %v591 = vmul.f32 %v583, 1.442695
    %v592 = vpow.pop %v591
    %v593 = vmul.f32 %v584, 1.442695
    %v594 = vpow.pop %v593
    %v595 = vmul.f32 %v585, 1.442695
    %v596 = vpow.pop %v595
    %v597 = vmul.f32 %v586, 1.442695
    %v598 = vpow.pop %v597
    %v599 = vmul.f32 %v587, 1.442695
    %v600 = vpow.pop %v599
    %v601 = vmul.f32 %v588, 1.442695
    %v602 = vpow.pop %v601
    %v603 = vmul.f32 %v589, 1.442695
    %v604 = vpow.pop %v603
    %v605 = vmul.f32 %v590, 1.442695
    %v606 = vpow.pop %v605
    %v607 = vsel %vm558, %v592, 0.0
    %608 = vadd.xlane.f32.xlu0 %v607
    %v609 = vpop.xlane.xlu0 %608
    %v610 = vsel %vm558, %v594, 0.0
    %611 = vadd.xlane.f32.xlu0 %v610
    %v612 = vpop.xlane.xlu0 %611
    %v613 = vsel %vm558, %v596, 0.0
    %614 = vadd.xlane.f32.xlu0 %v613
    %v615 = vpop.xlane.xlu0 %614
    %v616 = vsel %vm558, %v598, 0.0
    %617 = vadd.xlane.f32.xlu0 %v616
    %v618 = vpop.xlane.xlu0 %617
    %v619 = vsel %vm558, %v600, 0.0
    %620 = vadd.xlane.f32.xlu0 %v619
    %v621 = vpop.xlane.xlu0 %620
    %v622 = vsel %vm558, %v602, 0.0
    %623 = vadd.xlane.f32.xlu0 %v622
    %v624 = vpop.xlane.xlu0 %623
    %v625 = vsel %vm558, %v604, 0.0
    %626 = vadd.xlane.f32.xlu0 %v625
    %v627 = vpop.xlane.xlu0 %626
    %v628 = vsel %vm558, %v606, 0.0
    %629 = vadd.xlane.f32.xlu0 %v628
    %v630 = vpop.xlane.xlu0 %629
    %v631 = vrcp.pop %v609
    %v632 = vrcp.pop %v612
    %v633 = vrcp.pop %v615
    %v634 = vrcp.pop %v618
    %v635 = vrcp.pop %v621
    %v636 = vrcp.pop %v624
    %v637 = vrcp.pop %v627
    %v638 = vrcp.pop %v630
    %v639 = vmul.f32 %v592, %v631
    %v640 = vmul.f32 %v594, %v632
    %v641 = vmul.f32 %v596, %v633
    %v642 = vmul.f32 %v598, %v634
    %v643 = vmul.f32 %v600, %v635
    %v644 = vmul.f32 %v602, %v636
    %v645 = vmul.f32 %v604, %v637
    %v646 = vmul.f32 %v606, %v638
    %v647 = vpack.c.bf16 %v639, %v639
    %v648 = vpack.c.bf16 %v640, %v640
    %v649 = vpack.c.bf16 %v641, %v641
    %v650 = vpack.c.bf16 %v642, %v642
    %v651 = vpack.c.bf16 %v643, %v643
    %v652 = vpack.c.bf16 %v644, %v644
    %v653 = vpack.c.bf16 %v645, %v645
    %v654 = vpack.c.bf16 %v646, %v646
    %v655 = vpack.c.bf16 %v349, %v349
    %v656 = vpack.c.bf16 %v351, %v351
    %v657 = vpack.c.bf16 %v404, %v404
    %v658 = vpack.c.bf16 %v406, %v406
    %v659 = vpack.c.bf16 %v410, %v410
    %v660 = vpack.c.bf16 %v412, %v412
    %v661 = vpack.c.bf16 %v416, %v416
    %v662 = vpack.c.bf16 %v418, %v418
    %v665 = vunpack.c.l.b16 %v647
    %v666 = vunpack.c.l.b16 %v648
    %v667 = vpack.c.b16 %v666, %v665
    %v670 = vunpack.c.l.b16 %v655
    %v671 = vunpack.c.l.b16 %v656
    %v672 = vpack.c.b16 %v671, %v670
    %v675 = vsel %vm558, %v667, 0
    %677 = vmatpush.bf16.msra.mxu0 0
    %678 = vmatpush.bf16.msra.mxu0 0
    %679 = vmatpush.bf16.msra.mxu0 0
    %680 = vmatpush.bf16.msra.mxu0 0
    %681 = vmatpush.bf16.msra.mxu0 0
    %682 = vmatpush.bf16.msra.mxu0 0
    %683 = vmatpush.bf16.msra.mxu0 0
    %684 = vmatpush.bf16.msra.mxu0 %v672
    %685 = vmatmul.bf16.gmra.mxu0 %v675
    %v686 = vpop.f32.mrf.mxu0
    %v687 = vadd.f32 0.0, %v686
    %v688 = vpop.f32.mrf.mxu0
    %v689 = vadd.f32 0.0, %v688
    %690 = vdwg.mxu0
    %v693 = vunpack.c.l.b16 %v649
    %v694 = vunpack.c.l.b16 %v650
    %v695 = vpack.c.b16 %v694, %v693
    %v698 = vunpack.c.l.b16 %v657
    %v699 = vunpack.c.l.b16 %v658
    %v700 = vpack.c.b16 %v699, %v698
    %v703 = vsel %vm558, %v695, 0
    %705 = vmatpush.bf16.msra.mxu0 0
    %706 = vmatpush.bf16.msra.mxu0 0
    %707 = vmatpush.bf16.msra.mxu0 0
    %708 = vmatpush.bf16.msra.mxu0 0
    %709 = vmatpush.bf16.msra.mxu0 0
    %710 = vmatpush.bf16.msra.mxu0 0
    %711 = vmatpush.bf16.msra.mxu0 0
    %712 = vmatpush.bf16.msra.mxu0 %v700
    %713 = vmatmul.bf16.gmra.mxu0 %v703
    %v714 = vpop.f32.mrf.mxu0
    %v715 = vadd.f32 0.0, %v714
    %v716 = vpop.f32.mrf.mxu0
    %v717 = vadd.f32 0.0, %v716
    %718 = vdwg.mxu0
    %v721 = vunpack.c.l.b16 %v651
    %v722 = vunpack.c.l.b16 %v652
    %v723 = vpack.c.b16 %v722, %v721
    %v726 = vunpack.c.l.b16 %v659
    %v727 = vunpack.c.l.b16 %v660
    %v728 = vpack.c.b16 %v727, %v726
    %v731 = vsel %vm558, %v723, 0
    %733 = vmatpush.bf16.msra.mxu0 0
    %734 = vmatpush.bf16.msra.mxu0 0
    %735 = vmatpush.bf16.msra.mxu0 0
    %736 = vmatpush.bf16.msra.mxu0 0
    %737 = vmatpush.bf16.msra.mxu0 0
    %738 = vmatpush.bf16.msra.mxu0 0
    %739 = vmatpush.bf16.msra.mxu0 0
    %740 = vmatpush.bf16.msra.mxu0 %v728
    %741 = vmatmul.bf16.gmra.mxu0 %v731
    %v742 = vpop.f32.mrf.mxu0
    %v743 = vadd.f32 0.0, %v742
    %v744 = vpop.f32.mrf.mxu0
    %v745 = vadd.f32 0.0, %v744
    %746 = vdwg.mxu0
    %v749 = vunpack.c.l.b16 %v653
    %v750 = vunpack.c.l.b16 %v654
    %v751 = vpack.c.b16 %v750, %v749
    %v754 = vunpack.c.l.b16 %v661
    %v755 = vunpack.c.l.b16 %v662
    %v756 = vpack.c.b16 %v755, %v754
    %v759 = vsel %vm558, %v751, 0
    %761 = vmatpush.bf16.msra.mxu0 0
    %762 = vmatpush.bf16.msra.mxu0 0
    %763 = vmatpush.bf16.msra.mxu0 0
    %764 = vmatpush.bf16.msra.mxu0 0
    %765 = vmatpush.bf16.msra.mxu0 0
    %766 = vmatpush.bf16.msra.mxu0 0
    %767 = vmatpush.bf16.msra.mxu0 0
    %768 = vmatpush.bf16.msra.mxu0 %v756
    %769 = vmatmul.bf16.gmra.mxu0 %v759
    %v770 = vpop.f32.mrf.mxu0
    %v771 = vadd.f32 0.0, %v770
    %v772 = vpop.f32.mrf.mxu0
    %v773 = vadd.f32 0.0, %v772
    %774 = vdwg.mxu0
    %777 = vrot.lane.b32.xlu0 %v715, 32
    %v778 = vpop.permute.xlu0 %777
    %779 = vrot.lane.b32.xlu0 %v717, 32
    %v780 = vpop.permute.xlu0 %779
    %785 = vrot.lane.b32.xlu0 %v743, 64
    %v786 = vpop.permute.xlu0 %785
    %787 = vrot.lane.b32.xlu0 %v745, 64
    %v788 = vpop.permute.xlu0 %787
    %793 = vrot.lane.b32.xlu0 %v771, 96
    %v794 = vpop.permute.xlu0 %793
    %795 = vrot.lane.b32.xlu0 %v773, 96
    %v796 = vpop.permute.xlu0 %795
    %v799 = vsel %vm447, %v687, %v778
    %v800 = vsel %vm447, %v689, %v780
    %vm801 = vcmask 523264
    %v802 = vsel %vm801, %v799, %v786
    %v803 = vsel %vm801, %v800, %v788
    %vm804 = vcmask 785408
    %v805 = vsel %vm804, %v802, %v794
    %v806 = vsel %vm804, %v803, %v796
    %v807 = vpack.c.bf16 %v806, %v805
    %v808 = vld [vmem:[%s5] sm:$0xf]
    %v809 = vld [vmem:[%s5 + $0x4] sm:$0xf]
    %v810 = vld [vmem:[%s5 + $0x8] sm:$0xf]
    %v811 = vld [vmem:[%s5 + $0xc] sm:$0xf]
    %v812 = vld [vmem:[%s5 + $0x10] sm:$0xf]
    %v813 = vld [vmem:[%s5 + $0x14] sm:$0xf]
    %v814 = vld [vmem:[%s5 + $0x18] sm:$0xf]
    %v815 = vld [vmem:[%s5 + $0x1c] sm:$0xf]
    %v816 = vld [vmem:[%s5 + $0x20] sm:$0xf]
    %v817 = vld [vmem:[%s5 + $0x24] sm:$0xf]
    %v818 = vld [vmem:[%s5 + $0x28] sm:$0xf]
    %v819 = vld [vmem:[%s5 + $0x2c] sm:$0xf]
    %v820 = vld [vmem:[%s5 + $0x30] sm:$0xf]
    %v821 = vld [vmem:[%s5 + $0x34] sm:$0xf]
    %v822 = vld [vmem:[%s5 + $0x38] sm:$0xf]
    %v823 = vld [vmem:[%s5 + $0x3c] sm:$0xf]
    %v824 = vperm.slane %v142, 0
    %v841 = vunpack.c.l.b16 %v808
    %v842 = vunpack.c.l.b16 %v809
    %v843 = vunpack.c.l.b16 %v810
    %v844 = vunpack.c.l.b16 %v811
    %v845 = vunpack.c.l.b16 %v812
    %v846 = vunpack.c.l.b16 %v813
    %v847 = vunpack.c.l.b16 %v814
    %v848 = vunpack.c.l.b16 %v815
    %v849 = vunpack.c.l.b16 %v816
    %v850 = vunpack.c.l.b16 %v817
    %v851 = vunpack.c.l.b16 %v818
    %v852 = vunpack.c.l.b16 %v819
    %v853 = vunpack.c.l.b16 %v820
    %v854 = vunpack.c.l.b16 %v821
    %v855 = vunpack.c.l.b16 %v822
    %v856 = vunpack.c.l.b16 %v823
    %v857 = vpack.c.b16 %v842, %v841
    %v858 = vpack.c.b16 %v844, %v843
    %v859 = vpack.c.b16 %v846, %v845
    %v860 = vpack.c.b16 %v848, %v847
    %v861 = vpack.c.b16 %v850, %v849
    %v862 = vpack.c.b16 %v852, %v851
    %v863 = vpack.c.b16 %v854, %v853
    %v864 = vpack.c.b16 %v856, %v855
    %873 = vmatpush.bf16.msra.mxu0 %v864
    %874 = vmatpush.bf16.msra.mxu0 %v863
    %875 = vmatpush.bf16.msra.mxu0 %v862
    %876 = vmatpush.bf16.msra.mxu0 %v861
    %877 = vmatpush.bf16.msra.mxu0 %v860
    %878 = vmatpush.bf16.msra.mxu0 %v859
    %879 = vmatpush.bf16.msra.mxu0 %v858
    %880 = vmatpush.bf16.msra.mxu0 %v857
    %881 = vmatmul.bf16.gmra.mxu0 %v807
    %v882 = vpop.f32.mrf.mxu0
    %v883 = vadd.f32 %v824, %v882
    %v884 = vpop.f32.mrf.mxu0
    %v885 = vadd.f32 %v824, %v884
    %886 = vdwg.mxu0
    %v887 = vadd.f32 %v883, %v139
    %v888 = vadd.f32 %v885, %v140
    %889 = vadd.xlane.f32.xlu0 %v887
    %v890 = vpop.xlane.xlu0 %889
    %891 = vadd.xlane.f32.xlu0 %v888
    %v892 = vpop.xlane.xlu0 %891
    %v893 = vmul.f32 %v890, %v98
    %v894 = vmul.f32 %v892, %v98
    %v895 = vsub.f32 %v887, %v893
    %v896 = vsub.f32 %v888, %v894
    %v897 = vmul.f32 %v895, %v895
    %v898 = vmul.f32 %v896, %v896
    %899 = vadd.xlane.f32.xlu0 %v897
    %v900 = vpop.xlane.xlu0 %899
    %901 = vadd.xlane.f32.xlu0 %v898
    %v902 = vpop.xlane.xlu0 %901
    %v903 = vmul.f32 %v900, %v98
    %v904 = vmul.f32 %v902, %v98
    %v905 = vadd.f32 %v903, 1e-05
    %v906 = vadd.f32 %v904, 1e-05
    %v907 = vrsqrt.pop %v905
    %v908 = vmul.f32 %v907, %v905
    %v909 = vmul.f32 %v908, %v907
    %v910 = vmul.f32 0.5, %v909
    %v911 = vsub.f32 1.5, %v910
    %v912 = vmul.f32 %v907, %v911
    %vm913 = vweird.f32 %v905
    %vm914 = vweird.f32 %v907
    %vm915 = vmor %vm913, %vm914
    %v916 = vsel %vm915, %v907, %v912
    %v917 = vrsqrt.pop %v906
    %v918 = vmul.f32 %v917, %v906
    %v919 = vmul.f32 %v918, %v917
    %v920 = vmul.f32 0.5, %v919
    %v921 = vsub.f32 1.5, %v920
    %v922 = vmul.f32 %v917, %v921
    %vm923 = vweird.f32 %v906
    %vm924 = vweird.f32 %v917
    %vm925 = vmor %vm923, %vm924
    %v926 = vsel %vm925, %v917, %v922
    %v927 = vmul.f32 %v895, %v916
    %v928 = vmul.f32 %v896, %v926
    %v929 = vperm.slane %v142, 1
    %v930 = vmul.f32 %v927, %v929
    %v931 = vmul.f32 %v928, %v929
    %v932 = vperm.slane %v142, 2
    %v933 = vadd.f32 %v930, %v932
    %v934 = vadd.f32 %v931, %v932
    %v935 = vpack.c.bf16 %v934, %v933
    %v936 = vld [vmem:[%s7] sm:$0xff]
    %v937 = vld [vmem:[%s7 + $0x8] sm:$0xff]
    %v938 = vld [vmem:[%s7 + $0x10] sm:$0xff]
    %v939 = vld [vmem:[%s7 + $0x18] sm:$0xff]
    %v940 = vld [vmem:[%s7 + $0x20] sm:$0xff]
    %v941 = vld [vmem:[%s7 + $0x28] sm:$0xff]
    %v942 = vld [vmem:[%s7 + $0x30] sm:$0xff]
    %v943 = vld [vmem:[%s7 + $0x38] sm:$0xff]
    %v944 = vld [vmem:[%s7 + $0x40] sm:$0xff]
    %v945 = vld [vmem:[%s7 + $0x48] sm:$0xff]
    %v946 = vld [vmem:[%s7 + $0x50] sm:$0xff]
    %v947 = vld [vmem:[%s7 + $0x58] sm:$0xff]
    %v948 = vld [vmem:[%s7 + $0x60] sm:$0xff]
    %v949 = vld [vmem:[%s7 + $0x68] sm:$0xff]
    %v950 = vld [vmem:[%s7 + $0x70] sm:$0xff]
    %v951 = vld [vmem:[%s7 + $0x78] sm:$0xff]
    %v952 = vld [vmem:[%s8] sm:$0x3]
    %v954 = vperm.slane %v952, 0
    %v955 = vperm.slane %v952, 1
    %v974 = vunpack.c.l.b16 %v936
    %v975 = vunpack.c.h.b16 %v936
    %v976 = vunpack.c.l.b16 %v937
    %v977 = vunpack.c.h.b16 %v937
    %v978 = vunpack.c.l.b16 %v938
    %v979 = vunpack.c.h.b16 %v938
    %v980 = vunpack.c.l.b16 %v939
    %v981 = vunpack.c.h.b16 %v939
    %v982 = vunpack.c.l.b16 %v940
    %v983 = vunpack.c.h.b16 %v940
    %v984 = vunpack.c.l.b16 %v941
    %v985 = vunpack.c.h.b16 %v941
    %v986 = vunpack.c.l.b16 %v942
    %v987 = vunpack.c.h.b16 %v942
    %v988 = vunpack.c.l.b16 %v943
    %v989 = vunpack.c.h.b16 %v943
    %v990 = vunpack.c.l.b16 %v944
    %v991 = vunpack.c.h.b16 %v944
    %v992 = vunpack.c.l.b16 %v945
    %v993 = vunpack.c.h.b16 %v945
    %v994 = vunpack.c.l.b16 %v946
    %v995 = vunpack.c.h.b16 %v946
    %v996 = vunpack.c.l.b16 %v947
    %v997 = vunpack.c.h.b16 %v947
    %v998 = vunpack.c.l.b16 %v948
    %v999 = vunpack.c.h.b16 %v948
    %v1000 = vunpack.c.l.b16 %v949
    %v1001 = vunpack.c.h.b16 %v949
    %v1002 = vunpack.c.l.b16 %v950
    %v1003 = vunpack.c.h.b16 %v950
    %v1004 = vunpack.c.l.b16 %v951
    %v1005 = vunpack.c.h.b16 %v951
    %v1006 = vpack.c.b16 %v976, %v974
    %v1007 = vpack.c.b16 %v977, %v975
    %v1008 = vpack.c.b16 %v980, %v978
    %v1009 = vpack.c.b16 %v981, %v979
    %v1010 = vpack.c.b16 %v984, %v982
    %v1011 = vpack.c.b16 %v985, %v983
    %v1012 = vpack.c.b16 %v988, %v986
    %v1013 = vpack.c.b16 %v989, %v987
    %v1014 = vpack.c.b16 %v992, %v990
    %v1015 = vpack.c.b16 %v993, %v991
    %v1016 = vpack.c.b16 %v996, %v994
    %v1017 = vpack.c.b16 %v997, %v995
    %v1018 = vpack.c.b16 %v1000, %v998
    %v1019 = vpack.c.b16 %v1001, %v999
    %v1020 = vpack.c.b16 %v1004, %v1002
    %v1021 = vpack.c.b16 %v1005, %v1003
    %1038 = vmatpush.bf16.msra.mxu0 %v1020
    %1039 = vmatpush.bf16.msra.mxu0 %v1018
    %1040 = vmatpush.bf16.msra.mxu0 %v1016
    %1041 = vmatpush.bf16.msra.mxu0 %v1014
    %1042 = vmatpush.bf16.msra.mxu0 %v1012
    %1043 = vmatpush.bf16.msra.mxu0 %v1010
    %1044 = vmatpush.bf16.msra.mxu0 %v1008
    %1045 = vmatpush.bf16.msra.mxu0 %v1006
    %1046 = vmatmul.bf16.gmra.mxu0 %v935
    %v1047 = vpop.f32.mrf.mxu0
    %v1048 = vadd.f32 %v954, %v1047
    %v1049 = vpop.f32.mrf.mxu0
    %v1050 = vadd.f32 %v954, %v1049
    %1051 = vdwg.mxu0
    %1052 = vmatpush.bf16.msra.mxu0 %v1021
    %1053 = vmatpush.bf16.msra.mxu0 %v1019
    %1054 = vmatpush.bf16.msra.mxu0 %v1017
    %1055 = vmatpush.bf16.msra.mxu0 %v1015
    %1056 = vmatpush.bf16.msra.mxu0 %v1013
    %1057 = vmatpush.bf16.msra.mxu0 %v1011
    %1058 = vmatpush.bf16.msra.mxu0 %v1009
    %1059 = vmatpush.bf16.msra.mxu0 %v1007
    %1060 = vmatmul.bf16.gmra.mxu0 %v935
    %v1061 = vpop.f32.mrf.mxu0
    %v1062 = vadd.f32 %v955, %v1061
    %v1063 = vpop.f32.mrf.mxu0
    %v1064 = vadd.f32 %v955, %v1063
    %1065 = vdwg.mxu0
    %v1066 = vmul.f32 %v1048, %v1048
    %v1067 = vmul.f32 %v1062, %v1062
    %v1068 = vmul.f32 %v1050, %v1050
    %v1069 = vmul.f32 %v1064, %v1064
    %v1070 = vmul.f32 %v1048, %v1066
    %v1071 = vmul.f32 %v1062, %v1067
    %v1072 = vmul.f32 %v1050, %v1068
    %v1073 = vmul.f32 %v1064, %v1069
    %v1074 = vmul.f32 %v1070, 0.044715
    %v1075 = vmul.f32 %v1071, 0.044715
    %v1076 = vmul.f32 %v1072, 0.044715
    %v1077 = vmul.f32 %v1073, 0.044715
    %v1078 = vadd.f32 %v1048, %v1074
    %v1079 = vadd.f32 %v1062, %v1075
    %v1080 = vadd.f32 %v1050, %v1076
    %v1081 = vadd.f32 %v1064, %v1077
    %v1082 = vmul.f32 %v1078, 0.7978846
    %v1083 = vmul.f32 %v1079, 0.7978846
    %v1084 = vmul.f32 %v1080, 0.7978846
    %v1085 = vmul.f32 %v1081, 0.7978846
    %v1086 = vtanh.pop %v1082
    %v1087 = vtanh.pop %v1083
    %v1088 = vtanh.pop %v1084
    %v1089 = vtanh.pop %v1085
    %v1090 = vadd.f32 %v1086, 1.0
    %v1091 = vadd.f32 %v1087, 1.0
    %v1092 = vadd.f32 %v1088, 1.0
    %v1093 = vadd.f32 %v1089, 1.0
    %v1094 = vmul.f32 %v1090, 0.5
    %v1095 = vmul.f32 %v1091, 0.5
    %v1096 = vmul.f32 %v1092, 0.5
    %v1097 = vmul.f32 %v1093, 0.5
    %v1098 = vmul.f32 %v1048, %v1094
    %v1099 = vmul.f32 %v1062, %v1095
    %v1100 = vmul.f32 %v1050, %v1096
    %v1101 = vmul.f32 %v1064, %v1097
    %v1102 = vpack.c.bf16 %v1100, %v1098
    %v1103 = vpack.c.bf16 %v1101, %v1099
    %v1104 = vld [vmem:[#allocation4] sm:$0xf]
    %v1105 = vld [vmem:[#allocation4 + $0x4] sm:$0xf]
    %v1106 = vld [vmem:[#allocation4 + $0x8] sm:$0xf]
    %v1107 = vld [vmem:[#allocation4 + $0xc] sm:$0xf]
    %v1108 = vld [vmem:[#allocation4 + $0x10] sm:$0xf]
    %v1109 = vld [vmem:[#allocation4 + $0x14] sm:$0xf]
    %v1110 = vld [vmem:[#allocation4 + $0x18] sm:$0xf]
    %v1111 = vld [vmem:[#allocation4 + $0x1c] sm:$0xf]
    %v1112 = vld [vmem:[#allocation4 + $0x20] sm:$0xf]
    %v1113 = vld [vmem:[#allocation4 + $0x24] sm:$0xf]
    %v1114 = vld [vmem:[#allocation4 + $0x28] sm:$0xf]
    %v1115 = vld [vmem:[#allocation4 + $0x2c] sm:$0xf]
    %v1116 = vld [vmem:[#allocation4 + $0x30] sm:$0xf]
    %v1117 = vld [vmem:[#allocation4 + $0x34] sm:$0xf]
    %v1118 = vld [vmem:[#allocation4 + $0x38] sm:$0xf]
    %v1119 = vld [vmem:[#allocation4 + $0x3c] sm:$0xf]
    %v1120 = vld [vmem:[#allocation4 + $0x40] sm:$0xf]
    %v1121 = vld [vmem:[#allocation4 + $0x44] sm:$0xf]
    %v1122 = vld [vmem:[#allocation4 + $0x48] sm:$0xf]
    %v1123 = vld [vmem:[#allocation4 + $0x4c] sm:$0xf]
    %v1124 = vld [vmem:[#allocation4 + $0x50] sm:$0xf]
    %v1125 = vld [vmem:[#allocation4 + $0x54] sm:$0xf]
    %v1126 = vld [vmem:[#allocation4 + $0x58] sm:$0xf]
    %v1127 = vld [vmem:[#allocation4 + $0x5c] sm:$0xf]
    %v1128 = vld [vmem:[#allocation4 + $0x60] sm:$0xf]
    %v1129 = vld [vmem:[#allocation4 + $0x64] sm:$0xf]
    %v1130 = vld [vmem:[#allocation4 + $0x68] sm:$0xf]
    %v1131 = vld [vmem:[#allocation4 + $0x6c] sm:$0xf]
    %v1132 = vld [vmem:[#allocation4 + $0x70] sm:$0xf]
    %v1133 = vld [vmem:[#allocation4 + $0x74] sm:$0xf]
    %v1134 = vld [vmem:[#allocation4 + $0x78] sm:$0xf]
    %v1135 = vld [vmem:[#allocation4 + $0x7c] sm:$0xf]
    %v1136 = vperm.slane %v142, 3
    %v1169 = vunpack.c.l.b16 %v1104
    %v1170 = vunpack.c.l.b16 %v1105
    %v1171 = vunpack.c.l.b16 %v1106
    %v1172 = vunpack.c.l.b16 %v1107
    %v1173 = vunpack.c.l.b16 %v1108
    %v1174 = vunpack.c.l.b16 %v1109
    %v1175 = vunpack.c.l.b16 %v1110
    %v1176 = vunpack.c.l.b16 %v1111
    %v1177 = vunpack.c.l.b16 %v1112
    %v1178 = vunpack.c.l.b16 %v1113
    %v1179 = vunpack.c.l.b16 %v1114
    %v1180 = vunpack.c.l.b16 %v1115
    %v1181 = vunpack.c.l.b16 %v1116
    %v1182 = vunpack.c.l.b16 %v1117
    %v1183 = vunpack.c.l.b16 %v1118
    %v1184 = vunpack.c.l.b16 %v1119
    %v1185 = vunpack.c.l.b16 %v1120
    %v1186 = vunpack.c.l.b16 %v1121
    %v1187 = vunpack.c.l.b16 %v1122
    %v1188 = vunpack.c.l.b16 %v1123
    %v1189 = vunpack.c.l.b16 %v1124
    %v1190 = vunpack.c.l.b16 %v1125
    %v1191 = vunpack.c.l.b16 %v1126
    %v1192 = vunpack.c.l.b16 %v1127
    %v1193 = vunpack.c.l.b16 %v1128
    %v1194 = vunpack.c.l.b16 %v1129
    %v1195 = vunpack.c.l.b16 %v1130
    %v1196 = vunpack.c.l.b16 %v1131
    %v1197 = vunpack.c.l.b16 %v1132
    %v1198 = vunpack.c.l.b16 %v1133
    %v1199 = vunpack.c.l.b16 %v1134
    %v1200 = vunpack.c.l.b16 %v1135
    %v1201 = vpack.c.b16 %v1170, %v1169
    %v1202 = vpack.c.b16 %v1172, %v1171
    %v1203 = vpack.c.b16 %v1174, %v1173
    %v1204 = vpack.c.b16 %v1176, %v1175
    %v1205 = vpack.c.b16 %v1178, %v1177
    %v1206 = vpack.c.b16 %v1180, %v1179
    %v1207 = vpack.c.b16 %v1182, %v1181
    %v1208 = vpack.c.b16 %v1184, %v1183
    %v1209 = vpack.c.b16 %v1186, %v1185
    %v1210 = vpack.c.b16 %v1188, %v1187
    %v1211 = vpack.c.b16 %v1190, %v1189
    %v1212 = vpack.c.b16 %v1192, %v1191
    %v1213 = vpack.c.b16 %v1194, %v1193
    %v1214 = vpack.c.b16 %v1196, %v1195
    %v1215 = vpack.c.b16 %v1198, %v1197
    %v1216 = vpack.c.b16 %v1200, %v1199
    %1233 = vmatpush.bf16.msra.mxu0 %v1208
    %1234 = vmatpush.bf16.msra.mxu0 %v1207
    %1235 = vmatpush.bf16.msra.mxu0 %v1206
    %1236 = vmatpush.bf16.msra.mxu0 %v1205
    %1237 = vmatpush.bf16.msra.mxu0 %v1204
    %1238 = vmatpush.bf16.msra.mxu0 %v1203
    %1239 = vmatpush.bf16.msra.mxu0 %v1202
    %1240 = vmatpush.bf16.msra.mxu0 %v1201
    %1241 = vmatmul.bf16.gmra.mxu0 %v1102
    %v1242 = vpop.f32.mrf.mxu0
    %v1243 = vadd.f32 %v1136, %v1242
    %v1244 = vpop.f32.mrf.mxu0
    %v1245 = vadd.f32 %v1136, %v1244
    %1246 = vdwg.mxu0
    %1247 = vmatpush.bf16.msra.mxu0 %v1216
    %1248 = vmatpush.bf16.msra.mxu0 %v1215
    %1249 = vmatpush.bf16.msra.mxu0 %v1214
    %1250 = vmatpush.bf16.msra.mxu0 %v1213
    %1251 = vmatpush.bf16.msra.mxu0 %v1212
    %1252 = vmatpush.bf16.msra.mxu0 %v1211
    %1253 = vmatpush.bf16.msra.mxu0 %v1210
    %1254 = vmatpush.bf16.msra.mxu0 %v1209
    %1255 = vmatmul.bf16.gmra.mxu0 %v1103
    %v1256 = vpop.f32.mrf.mxu0
    %v1257 = vadd.f32 %v1243, %v1256
    %v1258 = vpop.f32.mrf.mxu0
    %v1259 = vadd.f32 %v1245, %v1258
    %1260 = vdwg.mxu0
    %v1261 = vadd.f32 %v1257, %v933
    %v1262 = vadd.f32 %v1259, %v934
    %1263 = vadd.xlane.f32.xlu0 %v1261
    %v1264 = vpop.xlane.xlu0 %1263
    %1265 = vadd.xlane.f32.xlu0 %v1262
    %v1266 = vpop.xlane.xlu0 %1265
    %v1267 = vmul.f32 %v1264, %v98
    %v1268 = vmul.f32 %v1266, %v98
    %v1269 = vsub.f32 %v1261, %v1267
    %v1270 = vsub.f32 %v1262, %v1268
    %v1271 = vmul.f32 %v1269, %v1269
    %v1272 = vmul.f32 %v1270, %v1270
    %1273 = vadd.xlane.f32.xlu0 %v1271
    %v1274 = vpop.xlane.xlu0 %1273
    %1275 = vadd.xlane.f32.xlu0 %v1272
    %v1276 = vpop.xlane.xlu0 %1275
    %v1277 = vmul.f32 %v1274, %v98
    %v1278 = vmul.f32 %v1276, %v98
    %v1279 = vadd.f32 %v1277, 1e-05
    %v1280 = vadd.f32 %v1278, 1e-05
    %v1281 = vrsqrt.pop %v1279
    %v1282 = vmul.f32 %v1281, %v1279
    %v1283 = vmul.f32 %v1282, %v1281
    %v1284 = vmul.f32 0.5, %v1283
    %v1285 = vsub.f32 1.5, %v1284
    %v1286 = vmul.f32 %v1281, %v1285
    %vm1287 = vweird.f32 %v1279
    %vm1288 = vweird.f32 %v1281
    %vm1289 = vmor %vm1287, %vm1288
    %v1290 = vsel %vm1289, %v1281, %v1286
    %v1291 = vrsqrt.pop %v1280
    %v1292 = vmul.f32 %v1291, %v1280
    %v1293 = vmul.f32 %v1292, %v1291
    %v1294 = vmul.f32 0.5, %v1293
    %v1295 = vsub.f32 1.5, %v1294
    %v1296 = vmul.f32 %v1291, %v1295
    %vm1297 = vweird.f32 %v1280
    %vm1298 = vweird.f32 %v1291
    %vm1299 = vmor %vm1297, %vm1298
    %v1300 = vsel %vm1299, %v1291, %v1296
    %v1301 = vmul.f32 %v1269, %v1290
    %v1302 = vmul.f32 %v1270, %v1300
    %v1303 = vperm.slane %v142, 4
    %v1304 = vmul.f32 %v1301, %v1303
    %v1305 = vmul.f32 %v1302, %v1303
    %v1306 = vperm.slane %v142, 5
    %v1307 = vadd.f32 %v1304, %v1306
    %v1308 = vadd.f32 %v1305, %v1306
    %v1309 = vpack.c.bf16 %v1308, %v1307
    %s1310 = scalar_lea.vmem %s6, 8
    %v1311 = vld [vmem:[%s1310] sm:$0x3f]
    %s1312 = scalar_lea.vmem [#allocation2], 192
    %v1313 = vld [vmem:[%s1312] sm:$0xff]
    %v1314 = vld [vmem:[%s1312 + $0x8] sm:$0xf]
    %v1315 = vld [vmem:[%s1312 + $0xc] sm:$0xff]
    %v1316 = vld [vmem:[%s1312 + $0x14] sm:$0xf]
    %v1317 = vld [vmem:[%s1312 + $0x18] sm:$0xff]
    %v1318 = vld [vmem:[%s1312 + $0x20] sm:$0xf]
    %v1319 = vld [vmem:[%s1312 + $0x24] sm:$0xff]
    %v1320 = vld [vmem:[%s1312 + $0x2c] sm:$0xf]
    %v1321 = vld [vmem:[%s1312 + $0x30] sm:$0xff]
    %v1322 = vld [vmem:[%s1312 + $0x38] sm:$0xf]
    %v1323 = vld [vmem:[%s1312 + $0x3c] sm:$0xff]
    %v1324 = vld [vmem:[%s1312 + $0x44] sm:$0xf]
    %v1325 = vld [vmem:[%s1312 + $0x48] sm:$0xff]
    %v1326 = vld [vmem:[%s1312 + $0x50] sm:$0xf]
    %v1327 = vld [vmem:[%s1312 + $0x54] sm:$0xff]
    %v1328 = vld [vmem:[%s1312 + $0x5c] sm:$0xf]
    %v1329 = vld [vmem:[%s1312 + $0x60] sm:$0xff]
    %v1330 = vld [vmem:[%s1312 + $0x68] sm:$0xf]
    %v1331 = vld [vmem:[%s1312 + $0x6c] sm:$0xff]
    %v1332 = vld [vmem:[%s1312 + $0x74] sm:$0xf]
    %v1333 = vld [vmem:[%s1312 + $0x78] sm:$0xff]
    %v1334 = vld [vmem:[%s1312 + $0x80] sm:$0xf]
    %v1335 = vld [vmem:[%s1312 + $0x84] sm:$0xff]
    %v1336 = vld [vmem:[%s1312 + $0x8c] sm:$0xf]
    %v1337 = vld [vmem:[%s1312 + $0x90] sm:$0xff]
    %v1338 = vld [vmem:[%s1312 + $0x98] sm:$0xf]
    %v1339 = vld [vmem:[%s1312 + $0x9c] sm:$0xff]
    %v1340 = vld [vmem:[%s1312 + $0xa4] sm:$0xf]
    %v1341 = vld [vmem:[%s1312 + $0xa8] sm:$0xff]
    %v1342 = vld [vmem:[%s1312 + $0xb0] sm:$0xf]
    %v1343 = vld [vmem:[%s1312 + $0xb4] sm:$0xff]
    %v1344 = vld [vmem:[%s1312 + $0xbc] sm:$0xf]
    %s1345 = scalar_lea.vmem %s4, 3
    %v1346 = vld [vmem:[%s1345] sm:$0x7]
    %v1348 = vperm.slane %v1346, 0
    %v1349 = vperm.slane %v1346, 1
    %v1350 = vperm.slane %v1346, 2
    %v1386 = vunpack.c.l.b16 %v1313
    %v1387 = vunpack.c.h.b16 %v1313
    %v1388 = vunpack.c.l.b16 %v1314
    %v1389 = vunpack.c.l.b16 %v1315
    %v1390 = vunpack.c.h.b16 %v1315
    %v1391 = vunpack.c.l.b16 %v1316
    %v1392 = vunpack.c.l.b16 %v1317
    %v1393 = vunpack.c.h.b16 %v1317
    %v1394 = vunpack.c.l.b16 %v1318
    %v1395 = vunpack.c.l.b16 %v1319
    %v1396 = vunpack.c.h.b16 %v1319
    %v1397 = vunpack.c.l.b16 %v1320
    %v1398 = vunpack.c.l.b16 %v1321
    %v1399 = vunpack.c.h.b16 %v1321
    %v1400 = vunpack.c.l.b16 %v1322
    %v1401 = vunpack.c.l.b16 %v1323
    %v1402 = vunpack.c.h.b16 %v1323
    %v1403 = vunpack.c.l.b16 %v1324
    %v1404 = vunpack.c.l.b16 %v1325
    %v1405 = vunpack.c.h.b16 %v1325
    %v1406 = vunpack.c.l.b16 %v1326
    %v1407 = vunpack.c.l.b16 %v1327
    %v1408 = vunpack.c.h.b16 %v1327
    %v1409 = vunpack.c.l.b16 %v1328
    %v1410 = vunpack.c.l.b16 %v1329
    %v1411 = vunpack.c.h.b16 %v1329
    %v1412 = vunpack.c.l.b16 %v1330
    %v1413 = vunpack.c.l.b16 %v1331
    %v1414 = vunpack.c.h.b16 %v1331
    %v1415 = vunpack.c.l.b16 %v1332
    %v1416 = vunpack.c.l.b16 %v1333
    %v1417 = vunpack.c.h.b16 %v1333
    %v1418 = vunpack.c.l.b16 %v1334
    %v1419 = vunpack.c.l.b16 %v1335
    %v1420 = vunpack.c.h.b16 %v1335
    %v1421 = vunpack.c.l.b16 %v1336
    %v1422 = vunpack.c.l.b16 %v1337
    %v1423 = vunpack.c.h.b16 %v1337
    %v1424 = vunpack.c.l.b16 %v1338
    %v1425 = vunpack.c.l.b16 %v1339
    %v1426 = vunpack.c.h.b16 %v1339
    %v1427 = vunpack.c.l.b16 %v1340
    %v1428 = vunpack.c.l.b16 %v1341
    %v1429 = vunpack.c.h.b16 %v1341
    %v1430 = vunpack.c.l.b16 %v1342
    %v1431 = vunpack.c.l.b16 %v1343
    %v1432 = vunpack.c.h.b16 %v1343
    %v1433 = vunpack.c.l.b16 %v1344
    %v1434 = vpack.c.b16 %v1389, %v1386
    %v1435 = vpack.c.b16 %v1390, %v1387
    %v1436 = vpack.c.b16 %v1391, %v1388
    %v1437 = vpack.c.b16 %v1395, %v1392
    %v1438 = vpack.c.b16 %v1396, %v1393
    %v1439 = vpack.c.b16 %v1397, %v1394
    %v1440 = vpack.c.b16 %v1401, %v1398
    %v1441 = vpack.c.b16 %v1402, %v1399
    %v1442 = vpack.c.b16 %v1403, %v1400
    %v1443 = vpack.c.b16 %v1407, %v1404
    %v1444 = vpack.c.b16 %v1408, %v1405
    %v1445 = vpack.c.b16 %v1409, %v1406
    %v1446 = vpack.c.b16 %v1413, %v1410
    %v1447 = vpack.c.b16 %v1414, %v1411
    %v1448 = vpack.c.b16 %v1415, %v1412
    %v1449 = vpack.c.b16 %v1419, %v1416
    %v1450 = vpack.c.b16 %v1420, %v1417
    %v1451 = vpack.c.b16 %v1421, %v1418
    %v1452 = vpack.c.b16 %v1425, %v1422
    %v1453 = vpack.c.b16 %v1426, %v1423
    %v1454 = vpack.c.b16 %v1427, %v1424
    %v1455 = vpack.c.b16 %v1431, %v1428
    %v1456 = vpack.c.b16 %v1432, %v1429
    %v1457 = vpack.c.b16 %v1433, %v1430
    %1482 = vmatpush.bf16.msra.mxu0 %v1455
    %1483 = vmatpush.bf16.msra.mxu0 %v1452
    %1484 = vmatpush.bf16.msra.mxu0 %v1449
    %1485 = vmatpush.bf16.msra.mxu0 %v1446
    %1486 = vmatpush.bf16.msra.mxu0 %v1443
    %1487 = vmatpush.bf16.msra.mxu0 %v1440
    %1488 = vmatpush.bf16.msra.mxu0 %v1437
    %1489 = vmatpush.bf16.msra.mxu0 %v1434
    %1490 = vmatmul.bf16.gmra.mxu0 %v1309
    %v1491 = vpop.f32.mrf.mxu0
    %v1492 = vadd.f32 %v1348, %v1491
    %v1493 = vpop.f32.mrf.mxu0
    %v1494 = vadd.f32 %v1348, %v1493
    %1495 = vdwg.mxu0
    %1496 = vmatpush.bf16.msra.mxu0 %v1456
    %1497 = vmatpush.bf16.msra.mxu0 %v1453
    %1498 = vmatpush.bf16.msra.mxu0 %v1450
    %1499 = vmatpush.bf16.msra.mxu0 %v1447
    %1500 = vmatpush.bf16.msra.mxu0 %v1444
    %1501 = vmatpush.bf16.msra.mxu0 %v1441
    %1502 = vmatpush.bf16.msra.mxu0 %v1438
    %1503 = vmatpush.bf16.msra.mxu0 %v1435
    %1504 = vmatmul.bf16.gmra.mxu0 %v1309
    %v1505 = vpop.f32.mrf.mxu0
    %v1506 = vadd.f32 %v1349, %v1505
    %v1507 = vpop.f32.mrf.mxu0
    %v1508 = vadd.f32 %v1349, %v1507
    %1509 = vdwg.mxu0
    %1510 = vmatpush.bf16.msra.mxu0 %v1457
    %1511 = vmatpush.bf16.msra.mxu0 %v1454
    %1512 = vmatpush.bf16.msra.mxu0 %v1451
    %1513 = vmatpush.bf16.msra.mxu0 %v1448
    %1514 = vmatpush.bf16.msra.mxu0 %v1445
    %1515 = vmatpush.bf16.msra.mxu0 %v1442
    %1516 = vmatpush.bf16.msra.mxu0 %v1439
    %1517 = vmatpush.bf16.msra.mxu0 %v1436
    %1518 = vmatmul.bf16.gmra.mxu0 %v1309
    %v1519 = vpop.f32.mrf.mxu0
    %v1520 = vadd.f32 %v1350, %v1519
    %v1521 = vpop.f32.mrf.mxu0
    %v1522 = vadd.f32 %v1350, %v1521
    %1523 = vdwg.mxu0
    %1526 = vrot.lane.b32.xlu0 %v1492, 96
    %v1527 = vpop.permute.xlu0 %1526
    %1528 = vrot.lane.b32.xlu0 %v1494, 96
    %v1529 = vpop.permute.xlu0 %1528
    %1532 = vrot.lane.b32.xlu0 %v1492, 64
    %v1533 = vpop.permute.xlu0 %1532
    %1534 = vrot.lane.b32.xlu0 %v1494, 64
    %v1535 = vpop.permute.xlu0 %1534
    %1538 = vrot.lane.b32.xlu0 %v1492, 32
    %v1539 = vpop.permute.xlu0 %1538
    %1540 = vrot.lane.b32.xlu0 %v1494, 32
    %v1541 = vpop.permute.xlu0 %1540
    %v1544 = vmul.f32 %v1492, 0.17677669
    %v1545 = vmul.f32 %v1494, 0.17677669
    %v1546 = vmul.f32 %v1527, 0.17677669
    %v1547 = vmul.f32 %v1529, 0.17677669
    %v1548 = vmul.f32 %v1533, 0.17677669
    %v1549 = vmul.f32 %v1535, 0.17677669
    %v1550 = vmul.f32 %v1539, 0.17677669
    %v1551 = vmul.f32 %v1541, 0.17677669
    %1554 = vrot.lane.b32.xlu0 %v1506, 96
    %v1555 = vpop.permute.xlu0 %1554
    %1556 = vrot.lane.b32.xlu0 %v1508, 96
    %v1557 = vpop.permute.xlu0 %1556
    %1560 = vrot.lane.b32.xlu0 %v1506, 64
    %v1561 = vpop.permute.xlu0 %1560
    %1562 = vrot.lane.b32.xlu0 %v1508, 64
    %v1563 = vpop.permute.xlu0 %1562
    %1566 = vrot.lane.b32.xlu0 %v1506, 32
    %v1567 = vpop.permute.xlu0 %1566
    %1568 = vrot.lane.b32.xlu0 %v1508, 32
    %v1569 = vpop.permute.xlu0 %1568
    %1574 = vrot.lane.b32.xlu0 %v1520, 96
    %v1575 = vpop.permute.xlu0 %1574
    %1576 = vrot.lane.b32.xlu0 %v1522, 96
    %v1577 = vpop.permute.xlu0 %1576
    %1580 = vrot.lane.b32.xlu0 %v1520, 64
    %v1581 = vpop.permute.xlu0 %1580
    %1582 = vrot.lane.b32.xlu0 %v1522, 64
    %v1583 = vpop.permute.xlu0 %1582
    %1586 = vrot.lane.b32.xlu0 %v1520, 32
    %v1587 = vpop.permute.xlu0 %1586
    %1588 = vrot.lane.b32.xlu0 %v1522, 32
    %v1589 = vpop.permute.xlu0 %1588
    %v1592 = vpack.c.bf16 %v1544, %v1544
    %v1593 = vpack.c.bf16 %v1545, %v1545
    %v1594 = vpack.c.bf16 %v1546, %v1546
    %v1595 = vpack.c.bf16 %v1547, %v1547
    %v1596 = vpack.c.bf16 %v1548, %v1548
    %v1597 = vpack.c.bf16 %v1549, %v1549
    %v1598 = vpack.c.bf16 %v1550, %v1550
    %v1599 = vpack.c.bf16 %v1551, %v1551
    %v1600 = vpack.c.bf16 %v1506, %v1506
    %v1601 = vpack.c.bf16 %v1508, %v1508
    %v1602 = vpack.c.bf16 %v1555, %v1555
    %v1603 = vpack.c.bf16 %v1557, %v1557
    %v1604 = vpack.c.bf16 %v1561, %v1561
    %v1605 = vpack.c.bf16 %v1563, %v1563
    %v1606 = vpack.c.bf16 %v1567, %v1567
    %v1607 = vpack.c.bf16 %v1569, %v1569
    %v1610 = vunpack.c.l.b16 %v1592
    %v1611 = vunpack.c.l.b16 %v1593
    %v1612 = vpack.c.b16 %v1611, %v1610
    %v1615 = vunpack.c.l.b16 %v1600
    %v1616 = vunpack.c.l.b16 %v1601
    %v1617 = vpack.c.b16 %v1616, %v1615
    %v1619 = vsel %vm447, %v1612, 0
    %v1622 = vsel %vm447, %v1617, 0
    %1624 = vmatpush.bf16.xpose.msra.mxu0 0
    %1625 = vmatpush.bf16.xpose.msra.mxu0 0
    %1626 = vmatpush.bf16.xpose.msra.mxu0 0
    %1627 = vmatpush.bf16.xpose.msra.mxu0 0
    %1628 = vmatpush.bf16.xpose.msra.mxu0 0
    %1629 = vmatpush.bf16.xpose.msra.mxu0 0
    %1630 = vmatpush.bf16.xpose.msra.mxu0 0
    %1631 = vmatpush.bf16.xpose.msra.mxu0 %v1622
    %1632 = vmatmul.bf16.gmra.mxu0 %v1619
    %v1633 = vpop.f32.mrf.mxu0
    %v1634 = vadd.f32 %v77, %v1633
    %v1635 = vpop.f32.mrf.mxu0
    %v1636 = vadd.f32 %v78, %v1635
    %1637 = vdwg.mxu0
    %v1640 = vunpack.c.l.b16 %v1594
    %v1641 = vunpack.c.l.b16 %v1595
    %v1642 = vpack.c.b16 %v1641, %v1640
    %v1645 = vunpack.c.l.b16 %v1602
    %v1646 = vunpack.c.l.b16 %v1603
    %v1647 = vpack.c.b16 %v1646, %v1645
    %v1649 = vsel %vm447, %v1642, 0
    %v1652 = vsel %vm447, %v1647, 0
    %1654 = vmatpush.bf16.xpose.msra.mxu0 0
    %1655 = vmatpush.bf16.xpose.msra.mxu0 0
    %1656 = vmatpush.bf16.xpose.msra.mxu0 0
    %1657 = vmatpush.bf16.xpose.msra.mxu0 0
    %1658 = vmatpush.bf16.xpose.msra.mxu0 0
    %1659 = vmatpush.bf16.xpose.msra.mxu0 0
    %1660 = vmatpush.bf16.xpose.msra.mxu0 0
    %1661 = vmatpush.bf16.xpose.msra.mxu0 %v1652
    %1662 = vmatmul.bf16.gmra.mxu0 %v1649
    %v1663 = vpop.f32.mrf.mxu0
    %v1664 = vadd.f32 %v79, %v1663
    %v1665 = vpop.f32.mrf.mxu0
    %v1666 = vadd.f32 %v80, %v1665
    %1667 = vdwg.mxu0
    %v1670 = vunpack.c.l.b16 %v1596
    %v1671 = vunpack.c.l.b16 %v1597
    %v1672 = vpack.c.b16 %v1671, %v1670
    %v1675 = vunpack.c.l.b16 %v1604
    %v1676 = vunpack.c.l.b16 %v1605
    %v1677 = vpack.c.b16 %v1676, %v1675
    %v1679 = vsel %vm447, %v1672, 0
    %v1682 = vsel %vm447, %v1677, 0
    %1684 = vmatpush.bf16.xpose.msra.mxu0 0
    %1685 = vmatpush.bf16.xpose.msra.mxu0 0
    %1686 = vmatpush.bf16.xpose.msra.mxu0 0
    %1687 = vmatpush.bf16.xpose.msra.mxu0 0
    %1688 = vmatpush.bf16.xpose.msra.mxu0 0
    %1689 = vmatpush.bf16.xpose.msra.mxu0 0
    %1690 = vmatpush.bf16.xpose.msra.mxu0 0
    %1691 = vmatpush.bf16.xpose.msra.mxu0 %v1682
    %1692 = vmatmul.bf16.gmra.mxu0 %v1679
    %v1693 = vpop.f32.mrf.mxu0
    %v1694 = vadd.f32 %v81, %v1693
    %v1695 = vpop.f32.mrf.mxu0
    %v1696 = vadd.f32 %v82, %v1695
    %1697 = vdwg.mxu0
    %v1700 = vunpack.c.l.b16 %v1598
    %v1701 = vunpack.c.l.b16 %v1599
    %v1702 = vpack.c.b16 %v1701, %v1700
    %v1705 = vunpack.c.l.b16 %v1606
    %v1706 = vunpack.c.l.b16 %v1607
    %v1707 = vpack.c.b16 %v1706, %v1705
    %v1709 = vsel %vm447, %v1702, 0
    %v1712 = vsel %vm447, %v1707, 0
    %1714 = vmatpush.bf16.xpose.msra.mxu0 0
    %1715 = vmatpush.bf16.xpose.msra.mxu0 0
    %1716 = vmatpush.bf16.xpose.msra.mxu0 0
    %1717 = vmatpush.bf16.xpose.msra.mxu0 0
    %1718 = vmatpush.bf16.xpose.msra.mxu0 0
    %1719 = vmatpush.bf16.xpose.msra.mxu0 0
    %1720 = vmatpush.bf16.xpose.msra.mxu0 0
    %1721 = vmatpush.bf16.xpose.msra.mxu0 %v1712
    %1722 = vmatmul.bf16.gmra.mxu0 %v1709
    %v1723 = vpop.f32.mrf.mxu0
    %v1724 = vadd.f32 %v83, %v1723
    %v1725 = vpop.f32.mrf.mxu0
    %v1726 = vadd.f32 %v84, %v1725
    %1727 = vdwg.mxu0
    %v1728 = vsel %vm558, %v1634, -inf
    %1729 = vmax.xlane.f32.xlu0 %v1728
    %v1730 = vpop.xlane.xlu0 %1729
    %v1731 = vsel %vm558, %v1636, -inf
    %1732 = vmax.xlane.f32.xlu0 %v1731
    %v1733 = vpop.xlane.xlu0 %1732
    %v1734 = vsel %vm558, %v1664, -inf
    %1735 = vmax.xlane.f32.xlu0 %v1734
    %v1736 = vpop.xlane.xlu0 %1735
    %v1737 = vsel %vm558, %v1666, -inf
    %1738 = vmax.xlane.f32.xlu0 %v1737
    %v1739 = vpop.xlane.xlu0 %1738
    %v1740 = vsel %vm558, %v1694, -inf
    %1741 = vmax.xlane.f32.xlu0 %v1740
    %v1742 = vpop.xlane.xlu0 %1741
    %v1743 = vsel %vm558, %v1696, -inf
    %1744 = vmax.xlane.f32.xlu0 %v1743
    %v1745 = vpop.xlane.xlu0 %1744
    %v1746 = vsel %vm558, %v1724, -inf
    %1747 = vmax.xlane.f32.xlu0 %v1746
    %v1748 = vpop.xlane.xlu0 %1747
    %v1749 = vsel %vm558, %v1726, -inf
    %1750 = vmax.xlane.f32.xlu0 %v1749
    %v1751 = vpop.xlane.xlu0 %1750
    %v1752 = vsub.f32 %v1634, %v1730
    %v1753 = vsub.f32 %v1636, %v1733
    %v1754 = vsub.f32 %v1664, %v1736
    %v1755 = vsub.f32 %v1666, %v1739
    %v1756 = vsub.f32 %v1694, %v1742
    %v1757 = vsub.f32 %v1696, %v1745
    %v1758 = vsub.f32 %v1724, %v1748
    %v1759 = vsub.f32 %v1726, %v1751
    %v1760 = vmul.f32 %v1752, 1.442695
    %v1761 = vpow.pop %v1760
    %v1762 = vmul.f32 %v1753, 1.442695
    %v1763 = vpow.pop %v1762
    %v1764 = vmul.f32 %v1754, 1.442695
    %v1765 = vpow.pop %v1764
    %v1766 = vmul.f32 %v1755, 1.442695
    %v1767 = vpow.pop %v1766
    %v1768 = vmul.f32 %v1756, 1.442695
    %v1769 = vpow.pop %v1768
    %v1770 = vmul.f32 %v1757, 1.442695
    %v1771 = vpow.pop %v1770
    %v1772 = vmul.f32 %v1758, 1.442695
    %v1773 = vpow.pop %v1772
    %v1774 = vmul.f32 %v1759, 1.442695
    %v1775 = vpow.pop %v1774
    %v1776 = vsel %vm558, %v1761, 0.0
    %1777 = vadd.xlane.f32.xlu0 %v1776
    %v1778 = vpop.xlane.xlu0 %1777
    %v1779 = vsel %vm558, %v1763, 0.0
    %1780 = vadd.xlane.f32.xlu0 %v1779
    %v1781 = vpop.xlane.xlu0 %1780
    %v1782 = vsel %vm558, %v1765, 0.0
    %1783 = vadd.xlane.f32.xlu0 %v1782
    %v1784 = vpop.xlane.xlu0 %1783
    %v1785 = vsel %vm558, %v1767, 0.0
    %1786 = vadd.xlane.f32.xlu0 %v1785
    %v1787 = vpop.xlane.xlu0 %1786
    %v1788 = vsel %vm558, %v1769, 0.0
    %1789 = vadd.xlane.f32.xlu0 %v1788
    %v1790 = vpop.xlane.xlu0 %1789
    %v1791 = vsel %vm558, %v1771, 0.0
    %1792 = vadd.xlane.f32.xlu0 %v1791
    %v1793 = vpop.xlane.xlu0 %1792
    %v1794 = vsel %vm558, %v1773, 0.0
    %1795 = vadd.xlane.f32.xlu0 %v1794
    %v1796 = vpop.xlane.xlu0 %1795
    %v1797 = vsel %vm558, %v1775, 0.0
    %1798 = vadd.xlane.f32.xlu0 %v1797
    %v1799 = vpop.xlane.xlu0 %1798
    %v1800 = vrcp.pop %v1778
    %v1801 = vrcp.pop %v1781
    %v1802 = vrcp.pop %v1784
    %v1803 = vrcp.pop %v1787
    %v1804 = vrcp.pop %v1790
    %v1805 = vrcp.pop %v1793
    %v1806 = vrcp.pop %v1796
    %v1807 = vrcp.pop %v1799
    %v1808 = vmul.f32 %v1761, %v1800
    %v1809 = vmul.f32 %v1763, %v1801
    %v1810 = vmul.f32 %v1765, %v1802
    %v1811 = vmul.f32 %v1767, %v1803
    %v1812 = vmul.f32 %v1769, %v1804
    %v1813 = vmul.f32 %v1771, %v1805
    %v1814 = vmul.f32 %v1773, %v1806
    %v1815 = vmul.f32 %v1775, %v1807
    %v1816 = vpack.c.bf16 %v1808, %v1808
    %v1817 = vpack.c.bf16 %v1809, %v1809
    %v1818 = vpack.c.bf16 %v1810, %v1810
    %v1819 = vpack.c.bf16 %v1811, %v1811
    %v1820 = vpack.c.bf16 %v1812, %v1812
    %v1821 = vpack.c.bf16 %v1813, %v1813
    %v1822 = vpack.c.bf16 %v1814, %v1814
    %v1823 = vpack.c.bf16 %v1815, %v1815
    %v1824 = vpack.c.bf16 %v1520, %v1520
    %v1825 = vpack.c.bf16 %v1522, %v1522
    %v1826 = vpack.c.bf16 %v1575, %v1575
    %v1827 = vpack.c.bf16 %v1577, %v1577
    %v1828 = vpack.c.bf16 %v1581, %v1581
    %v1829 = vpack.c.bf16 %v1583, %v1583
    %v1830 = vpack.c.bf16 %v1587, %v1587
    %v1831 = vpack.c.bf16 %v1589, %v1589
    %v1834 = vunpack.c.l.b16 %v1816
    %v1835 = vunpack.c.l.b16 %v1817
    %v1836 = vpack.c.b16 %v1835, %v1834
    %v1839 = vunpack.c.l.b16 %v1824
    %v1840 = vunpack.c.l.b16 %v1825
    %v1841 = vpack.c.b16 %v1840, %v1839
    %v1844 = vsel %vm558, %v1836, 0
    %1846 = vmatpush.bf16.msra.mxu0 0
    %1847 = vmatpush.bf16.msra.mxu0 0
    %1848 = vmatpush.bf16.msra.mxu0 0
    %1849 = vmatpush.bf16.msra.mxu0 0
    %1850 = vmatpush.bf16.msra.mxu0 0
    %1851 = vmatpush.bf16.msra.mxu0 0
    %1852 = vmatpush.bf16.msra.mxu0 0
    %1853 = vmatpush.bf16.msra.mxu0 %v1841
    %1854 = vmatmul.bf16.gmra.mxu0 %v1844
    %v1855 = vpop.f32.mrf.mxu0
    %v1856 = vadd.f32 0.0, %v1855
    %v1857 = vpop.f32.mrf.mxu0
    %v1858 = vadd.f32 0.0, %v1857
    %1859 = vdwg.mxu0
    %v1862 = vunpack.c.l.b16 %v1818
    %v1863 = vunpack.c.l.b16 %v1819
    %v1864 = vpack.c.b16 %v1863, %v1862
    %v1867 = vunpack.c.l.b16 %v1826
    %v1868 = vunpack.c.l.b16 %v1827
    %v1869 = vpack.c.b16 %v1868, %v1867
    %v1872 = vsel %vm558, %v1864, 0
    %1874 = vmatpush.bf16.msra.mxu0 0
    %1875 = vmatpush.bf16.msra.mxu0 0
    %1876 = vmatpush.bf16.msra.mxu0 0
    %1877 = vmatpush.bf16.msra.mxu0 0
    %1878 = vmatpush.bf16.msra.mxu0 0
    %1879 = vmatpush.bf16.msra.mxu0 0
    %1880 = vmatpush.bf16.msra.mxu0 0
    %1881 = vmatpush.bf16.msra.mxu0 %v1869
    %1882 = vmatmul.bf16.gmra.mxu0 %v1872
    %v1883 = vpop.f32.mrf.mxu0
    %v1884 = vadd.f32 0.0, %v1883
    %v1885 = vpop.f32.mrf.mxu0
    %v1886 = vadd.f32 0.0, %v1885
    %1887 = vdwg.mxu0
    %v1890 = vunpack.c.l.b16 %v1820
    %v1891 = vunpack.c.l.b16 %v1821
    %v1892 = vpack.c.b16 %v1891, %v1890
    %v1895 = vunpack.c.l.b16 %v1828
    %v1896 = vunpack.c.l.b16 %v1829
    %v1897 = vpack.c.b16 %v1896, %v1895
    %v1900 = vsel %vm558, %v1892, 0
    %1902 = vmatpush.bf16.msra.mxu0 0
    %1903 = vmatpush.bf16.msra.mxu0 0
    %1904 = vmatpush.bf16.msra.mxu0 0
    %1905 = vmatpush.bf16.msra.mxu0 0
    %1906 = vmatpush.bf16.msra.mxu0 0
    %1907 = vmatpush.bf16.msra.mxu0 0
    %1908 = vmatpush.bf16.msra.mxu0 0
    %1909 = vmatpush.bf16.msra.mxu0 %v1897
    %1910 = vmatmul.bf16.gmra.mxu0 %v1900
    %v1911 = vpop.f32.mrf.mxu0
    %v1912 = vadd.f32 0.0, %v1911
    %v1913 = vpop.f32.mrf.mxu0
    %v1914 = vadd.f32 0.0, %v1913
    %1915 = vdwg.mxu0
    %v1918 = vunpack.c.l.b16 %v1822
    %v1919 = vunpack.c.l.b16 %v1823
    %v1920 = vpack.c.b16 %v1919, %v1918
    %v1923 = vunpack.c.l.b16 %v1830
    %v1924 = vunpack.c.l.b16 %v1831
    %v1925 = vpack.c.b16 %v1924, %v1923
    %v1928 = vsel %vm558, %v1920, 0
    %1930 = vmatpush.bf16.msra.mxu0 0
    %1931 = vmatpush.bf16.msra.mxu0 0
    %1932 = vmatpush.bf16.msra.mxu0 0
    %1933 = vmatpush.bf16.msra.mxu0 0
    %1934 = vmatpush.bf16.msra.mxu0 0
    %1935 = vmatpush.bf16.msra.mxu0 0
    %1936 = vmatpush.bf16.msra.mxu0 0
    %1937 = vmatpush.bf16.msra.mxu0 %v1925
    %1938 = vmatmul.bf16.gmra.mxu0 %v1928
    %v1939 = vpop.f32.mrf.mxu0
    %v1940 = vadd.f32 0.0, %v1939
    %v1941 = vpop.f32.mrf.mxu0
    %v1942 = vadd.f32 0.0, %v1941
    %1943 = vdwg.mxu0
    %1946 = vrot.lane.b32.xlu0 %v1884, 32
    %v1947 = vpop.permute.xlu0 %1946
    %1948 = vrot.lane.b32.xlu0 %v1886, 32
    %v1949 = vpop.permute.xlu0 %1948
    %1954 = vrot.lane.b32.xlu0 %v1912, 64
    %v1955 = vpop.permute.xlu0 %1954
    %1956 = vrot.lane.b32.xlu0 %v1914, 64
    %v1957 = vpop.permute.xlu0 %1956
    %1962 = vrot.lane.b32.xlu0 %v1940, 96
    %v1963 = vpop.permute.xlu0 %1962
    %1964 = vrot.lane.b32.xlu0 %v1942, 96
    %v1965 = vpop.permute.xlu0 %1964
    %v1968 = vsel %vm447, %v1856, %v1947
    %v1969 = vsel %vm447, %v1858, %v1949
    %v1970 = vsel %vm801, %v1968, %v1955
    %v1971 = vsel %vm801, %v1969, %v1957
    %v1972 = vsel %vm804, %v1970, %v1963
    %v1973 = vsel %vm804, %v1971, %v1965
    %v1974 = vpack.c.bf16 %v1973, %v1972
    %s1975 = scalar_lea.vmem %s5, 64
    %v1976 = vld [vmem:[%s1975] sm:$0xf]
    %v1977 = vld [vmem:[%s1975 + $0x4] sm:$0xf]
    %v1978 = vld [vmem:[%s1975 + $0x8] sm:$0xf]
    %v1979 = vld [vmem:[%s1975 + $0xc] sm:$0xf]
    %v1980 = vld [vmem:[%s1975 + $0x10] sm:$0xf]
    %v1981 = vld [vmem:[%s1975 + $0x14] sm:$0xf]
    %v1982 = vld [vmem:[%s1975 + $0x18] sm:$0xf]
    %v1983 = vld [vmem:[%s1975 + $0x1c] sm:$0xf]
    %v1984 = vld [vmem:[%s1975 + $0x20] sm:$0xf]
    %v1985 = vld [vmem:[%s1975 + $0x24] sm:$0xf]
    %v1986 = vld [vmem:[%s1975 + $0x28] sm:$0xf]
    %v1987 = vld [vmem:[%s1975 + $0x2c] sm:$0xf]
    %v1988 = vld [vmem:[%s1975 + $0x30] sm:$0xf]
    %v1989 = vld [vmem:[%s1975 + $0x34] sm:$0xf]
    %v1990 = vld [vmem:[%s1975 + $0x38] sm:$0xf]
    %v1991 = vld [vmem:[%s1975 + $0x3c] sm:$0xf]
    %v1992 = vperm.slane %v1311, 0
    %v2009 = vunpack.c.l.b16 %v1976
    %v2010 = vunpack.c.l.b16 %v1977
    %v2011 = vunpack.c.l.b16 %v1978
    %v2012 = vunpack.c.l.b16 %v1979
    %v2013 = vunpack.c.l.b16 %v1980
    %v2014 = vunpack.c.l.b16 %v1981
    %v2015 = vunpack.c.l.b16 %v1982
    %v2016 = vunpack.c.l.b16 %v1983
    %v2017 = vunpack.c.l.b16 %v1984
    %v2018 = vunpack.c.l.b16 %v1985
    %v2019 = vunpack.c.l.b16 %v1986
    %v2020 = vunpack.c.l.b16 %v1987
    %v2021 = vunpack.c.l.b16 %v1988
    %v2022 = vunpack.c.l.b16 %v1989
    %v2023 = vunpack.c.l.b16 %v1990
    %v2024 = vunpack.c.l.b16 %v1991
    %v2025 = vpack.c.b16 %v2010, %v2009
    %v2026 = vpack.c.b16 %v2012, %v2011
    %v2027 = vpack.c.b16 %v2014, %v2013
    %v2028 = vpack.c.b16 %v2016, %v2015
    %v2029 = vpack.c.b16 %v2018, %v2017
    %v2030 = vpack.c.b16 %v2020, %v2019
    %v2031 = vpack.c.b16 %v2022, %v2021
    %v2032 = vpack.c.b16 %v2024, %v2023
    %2041 = vmatpush.bf16.msra.mxu0 %v2032
    %2042 = vmatpush.bf16.msra.mxu0 %v2031
    %2043 = vmatpush.bf16.msra.mxu0 %v2030
    %2044 = vmatpush.bf16.msra.mxu0 %v2029
    %2045 = vmatpush.bf16.msra.mxu0 %v2028
    %2046 = vmatpush.bf16.msra.mxu0 %v2027
    %2047 = vmatpush.bf16.msra.mxu0 %v2026
    %2048 = vmatpush.bf16.msra.mxu0 %v2025
    %2049 = vmatmul.bf16.gmra.mxu0 %v1974
    %v2050 = vpop.f32.mrf.mxu0
    %v2051 = vadd.f32 %v1992, %v2050
    %v2052 = vpop.f32.mrf.mxu0
    %v2053 = vadd.f32 %v1992, %v2052
    %2054 = vdwg.mxu0
    %v2055 = vadd.f32 %v2051, %v1307
    %v2056 = vadd.f32 %v2053, %v1308
    %2057 = vadd.xlane.f32.xlu0 %v2055
    %v2058 = vpop.xlane.xlu0 %2057
    %2059 = vadd.xlane.f32.xlu0 %v2056
    %v2060 = vpop.xlane.xlu0 %2059
    %v2061 = vmul.f32 %v2058, %v98
    %v2062 = vmul.f32 %v2060, %v98
    %v2063 = vsub.f32 %v2055, %v2061
    %v2064 = vsub.f32 %v2056, %v2062
    %v2065 = vmul.f32 %v2063, %v2063
    %v2066 = vmul.f32 %v2064, %v2064
    %2067 = vadd.xlane.f32.xlu0 %v2065
    %v2068 = vpop.xlane.xlu0 %2067
    %2069 = vadd.xlane.f32.xlu0 %v2066
    %v2070 = vpop.xlane.xlu0 %2069
    %v2071 = vmul.f32 %v2068, %v98
    %v2072 = vmul.f32 %v2070, %v98
    %v2073 = vadd.f32 %v2071, 1e-05
    %v2074 = vadd.f32 %v2072, 1e-05
    %v2075 = vrsqrt.pop %v2073
    %v2076 = vmul.f32 %v2075, %v2073
    %v2077 = vmul.f32 %v2076, %v2075
    %v2078 = vmul.f32 0.5, %v2077
    %v2079 = vsub.f32 1.5, %v2078
    %v2080 = vmul.f32 %v2075, %v2079
    %vm2081 = vweird.f32 %v2073
    %vm2082 = vweird.f32 %v2075
    %vm2083 = vmor %vm2081, %vm2082
    %v2084 = vsel %vm2083, %v2075, %v2080
    %v2085 = vrsqrt.pop %v2074
    %v2086 = vmul.f32 %v2085, %v2074
    %v2087 = vmul.f32 %v2086, %v2085
    %v2088 = vmul.f32 0.5, %v2087
    %v2089 = vsub.f32 1.5, %v2088
    %v2090 = vmul.f32 %v2085, %v2089
    %vm2091 = vweird.f32 %v2074
    %vm2092 = vweird.f32 %v2085
    %vm2093 = vmor %vm2091, %vm2092
    %v2094 = vsel %vm2093, %v2085, %v2090
    %v2095 = vmul.f32 %v2063, %v2084
    %v2096 = vmul.f32 %v2064, %v2094
    %v2097 = vperm.slane %v1311, 1
    %v2098 = vmul.f32 %v2095, %v2097
    %v2099 = vmul.f32 %v2096, %v2097
    %v2100 = vperm.slane %v1311, 2
    %v2101 = vadd.f32 %v2098, %v2100
    %v2102 = vadd.f32 %v2099, %v2100
    %v2103 = vpack.c.bf16 %v2102, %v2101
    %s2104 = scalar_lea.vmem %s7, 128
    %v2105 = vld [vmem:[%s2104] sm:$0xff]
    %v2106 = vld [vmem:[%s2104 + $0x8] sm:$0xff]
    %v2107 = vld [vmem:[%s2104 + $0x10] sm:$0xff]
    %v2108 = vld [vmem:[%s2104 + $0x18] sm:$0xff]
    %v2109 = vld [vmem:[%s2104 + $0x20] sm:$0xff]
    %v2110 = vld [vmem:[%s2104 + $0x28] sm:$0xff]
    %v2111 = vld [vmem:[%s2104 + $0x30] sm:$0xff]
    %v2112 = vld [vmem:[%s2104 + $0x38] sm:$0xff]
    %v2113 = vld [vmem:[%s2104 + $0x40] sm:$0xff]
    %v2114 = vld [vmem:[%s2104 + $0x48] sm:$0xff]
    %v2115 = vld [vmem:[%s2104 + $0x50] sm:$0xff]
    %v2116 = vld [vmem:[%s2104 + $0x58] sm:$0xff]
    %v2117 = vld [vmem:[%s2104 + $0x60] sm:$0xff]
    %v2118 = vld [vmem:[%s2104 + $0x68] sm:$0xff]
    %v2119 = vld [vmem:[%s2104 + $0x70] sm:$0xff]
    %v2120 = vld [vmem:[%s2104 + $0x78] sm:$0xff]
    %s2121 = scalar_lea.vmem %s8, 2
    %v2122 = vld [vmem:[%s2121] sm:$0x3]
    %v2124 = vperm.slane %v2122, 0
    %v2125 = vperm.slane %v2122, 1
    %v2144 = vunpack.c.l.b16 %v2105
    %v2145 = vunpack.c.h.b16 %v2105
    %v2146 = vunpack.c.l.b16 %v2106
    %v2147 = vunpack.c.h.b16 %v2106
    %v2148 = vunpack.c.l.b16 %v2107
    %v2149 = vunpack.c.h.b16 %v2107
    %v2150 = vunpack.c.l.b16 %v2108
    %v2151 = vunpack.c.h.b16 %v2108
    %v2152 = vunpack.c.l.b16 %v2109
    %v2153 = vunpack.c.h.b16 %v2109
    %v2154 = vunpack.c.l.b16 %v2110
    %v2155 = vunpack.c.h.b16 %v2110
    %v2156 = vunpack.c.l.b16 %v2111
    %v2157 = vunpack.c.h.b16 %v2111
    %v2158 = vunpack.c.l.b16 %v2112
    %v2159 = vunpack.c.h.b16 %v2112
    %v2160 = vunpack.c.l.b16 %v2113
    %v2161 = vunpack.c.h.b16 %v2113
    %v2162 = vunpack.c.l.b16 %v2114
    %v2163 = vunpack.c.h.b16 %v2114
    %v2164 = vunpack.c.l.b16 %v2115
    %v2165 = vunpack.c.h.b16 %v2115
    %v2166 = vunpack.c.l.b16 %v2116
    %v2167 = vunpack.c.h.b16 %v2116
    %v2168 = vunpack.c.l.b16 %v2117
    %v2169 = vunpack.c.h.b16 %v2117
    %v2170 = vunpack.c.l.b16 %v2118
    %v2171 = vunpack.c.h.b16 %v2118
    %v2172 = vunpack.c.l.b16 %v2119
    %v2173 = vunpack.c.h.b16 %v2119
    %v2174 = vunpack.c.l.b16 %v2120
    %v2175 = vunpack.c.h.b16 %v2120
    %v2176 = vpack.c.b16 %v2146, %v2144
    %v2177 = vpack.c.b16 %v2147, %v2145
    %v2178 = vpack.c.b16 %v2150, %v2148
    %v2179 = vpack.c.b16 %v2151, %v2149
    %v2180 = vpack.c.b16 %v2154, %v2152
    %v2181 = vpack.c.b16 %v2155, %v2153
    %v2182 = vpack.c.b16 %v2158, %v2156
    %v2183 = vpack.c.b16 %v2159, %v2157
    %v2184 = vpack.c.b16 %v2162, %v2160
    %v2185 = vpack.c.b16 %v2163, %v2161
    %v2186 = vpack.c.b16 %v2166, %v2164
    %v2187 = vpack.c.b16 %v2167, %v2165
    %v2188 = vpack.c.b16 %v2170, %v2168
    %v2189 = vpack.c.b16 %v2171, %v2169
    %v2190 = vpack.c.b16 %v2174, %v2172
    %v2191 = vpack.c.b16 %v2175, %v2173
    %2208 = vmatpush.bf16.msra.mxu0 %v2190
    %2209 = vmatpush.bf16.msra.mxu0 %v2188
    %2210 = vmatpush.bf16.msra.mxu0 %v2186
    %2211 = vmatpush.bf16.msra.mxu0 %v2184
    %2212 = vmatpush.bf16.msra.mxu0 %v2182
    %2213 = vmatpush.bf16.msra.mxu0 %v2180
    %2214 = vmatpush.bf16.msra.mxu0 %v2178
    %2215 = vmatpush.bf16.msra.mxu0 %v2176
    %2216 = vmatmul.bf16.gmra.mxu0 %v2103
    %v2217 = vpop.f32.mrf.mxu0
    %v2218 = vadd.f32 %v2124, %v2217
    %v2219 = vpop.f32.mrf.mxu0
    %v2220 = vadd.f32 %v2124, %v2219
    %2221 = vdwg.mxu0
    %2222 = vmatpush.bf16.msra.mxu0 %v2191
    %2223 = vmatpush.bf16.msra.mxu0 %v2189
    %2224 = vmatpush.bf16.msra.mxu0 %v2187
    %2225 = vmatpush.bf16.msra.mxu0 %v2185
    %2226 = vmatpush.bf16.msra.mxu0 %v2183
    %2227 = vmatpush.bf16.msra.mxu0 %v2181
    %2228 = vmatpush.bf16.msra.mxu0 %v2179
    %2229 = vmatpush.bf16.msra.mxu0 %v2177
    %2230 = vmatmul.bf16.gmra.mxu0 %v2103
    %v2231 = vpop.f32.mrf.mxu0
    %v2232 = vadd.f32 %v2125, %v2231
    %v2233 = vpop.f32.mrf.mxu0
    %v2234 = vadd.f32 %v2125, %v2233
    %2235 = vdwg.mxu0
    %v2236 = vmul.f32 %v2218, %v2218
    %v2237 = vmul.f32 %v2232, %v2232
    %v2238 = vmul.f32 %v2220, %v2220
    %v2239 = vmul.f32 %v2234, %v2234
    %v2240 = vmul.f32 %v2218, %v2236
    %v2241 = vmul.f32 %v2232, %v2237
    %v2242 = vmul.f32 %v2220, %v2238
    %v2243 = vmul.f32 %v2234, %v2239
    %v2244 = vmul.f32 %v2240, 0.044715
    %v2245 = vmul.f32 %v2241, 0.044715
    %v2246 = vmul.f32 %v2242, 0.044715
    %v2247 = vmul.f32 %v2243, 0.044715
    %v2248 = vadd.f32 %v2218, %v2244
    %v2249 = vadd.f32 %v2232, %v2245
    %v2250 = vadd.f32 %v2220, %v2246
    %v2251 = vadd.f32 %v2234, %v2247
    %v2252 = vmul.f32 %v2248, 0.7978846
    %v2253 = vmul.f32 %v2249, 0.7978846
    %v2254 = vmul.f32 %v2250, 0.7978846
    %v2255 = vmul.f32 %v2251, 0.7978846
    %v2256 = vtanh.pop %v2252
    %v2257 = vtanh.pop %v2253
    %v2258 = vtanh.pop %v2254
    %v2259 = vtanh.pop %v2255
    %v2260 = vadd.f32 %v2256, 1.0
    %v2261 = vadd.f32 %v2257, 1.0
    %v2262 = vadd.f32 %v2258, 1.0
    %v2263 = vadd.f32 %v2259, 1.0
    %v2264 = vmul.f32 %v2260, 0.5
    %v2265 = vmul.f32 %v2261, 0.5
    %v2266 = vmul.f32 %v2262, 0.5
    %v2267 = vmul.f32 %v2263, 0.5
    %v2268 = vmul.f32 %v2218, %v2264
    %v2269 = vmul.f32 %v2232, %v2265
    %v2270 = vmul.f32 %v2220, %v2266
    %v2271 = vmul.f32 %v2234, %v2267
    %v2272 = vpack.c.bf16 %v2270, %v2268
    %v2273 = vpack.c.bf16 %v2271, %v2269
    %s2274 = scalar_lea.vmem [#allocation4], 128
    %v2275 = vld [vmem:[%s2274] sm:$0xf]
    %v2276 = vld [vmem:[%s2274 + $0x4] sm:$0xf]
    %v2277 = vld [vmem:[%s2274 + $0x8] sm:$0xf]
    %v2278 = vld [vmem:[%s2274 + $0xc] sm:$0xf]
    %v2279 = vld [vmem:[%s2274 + $0x10] sm:$0xf]
    %v2280 = vld [vmem:[%s2274 + $0x14] sm:$0xf]
    %v2281 = vld [vmem:[%s2274 + $0x18] sm:$0xf]
    %v2282 = vld [vmem:[%s2274 + $0x1c] sm:$0xf]
    %v2283 = vld [vmem:[%s2274 + $0x20] sm:$0xf]
    %v2284 = vld [vmem:[%s2274 + $0x24] sm:$0xf]
    %v2285 = vld [vmem:[%s2274 + $0x28] sm:$0xf]
    %v2286 = vld [vmem:[%s2274 + $0x2c] sm:$0xf]
    %v2287 = vld [vmem:[%s2274 + $0x30] sm:$0xf]
    %v2288 = vld [vmem:[%s2274 + $0x34] sm:$0xf]
    %v2289 = vld [vmem:[%s2274 + $0x38] sm:$0xf]
    %v2290 = vld [vmem:[%s2274 + $0x3c] sm:$0xf]
    %v2291 = vld [vmem:[%s2274 + $0x40] sm:$0xf]
    %v2292 = vld [vmem:[%s2274 + $0x44] sm:$0xf]
    %v2293 = vld [vmem:[%s2274 + $0x48] sm:$0xf]
    %v2294 = vld [vmem:[%s2274 + $0x4c] sm:$0xf]
    %v2295 = vld [vmem:[%s2274 + $0x50] sm:$0xf]
    %v2296 = vld [vmem:[%s2274 + $0x54] sm:$0xf]
    %v2297 = vld [vmem:[%s2274 + $0x58] sm:$0xf]
    %v2298 = vld [vmem:[%s2274 + $0x5c] sm:$0xf]
    %v2299 = vld [vmem:[%s2274 + $0x60] sm:$0xf]
    %v2300 = vld [vmem:[%s2274 + $0x64] sm:$0xf]
    %v2301 = vld [vmem:[%s2274 + $0x68] sm:$0xf]
    %v2302 = vld [vmem:[%s2274 + $0x6c] sm:$0xf]
    %v2303 = vld [vmem:[%s2274 + $0x70] sm:$0xf]
    %v2304 = vld [vmem:[%s2274 + $0x74] sm:$0xf]
    %v2305 = vld [vmem:[%s2274 + $0x78] sm:$0xf]
    %v2306 = vld [vmem:[%s2274 + $0x7c] sm:$0xf]
    %v2307 = vperm.slane %v1311, 3
    %v2340 = vunpack.c.l.b16 %v2275
    %v2341 = vunpack.c.l.b16 %v2276
    %v2342 = vunpack.c.l.b16 %v2277
    %v2343 = vunpack.c.l.b16 %v2278
    %v2344 = vunpack.c.l.b16 %v2279
    %v2345 = vunpack.c.l.b16 %v2280
    %v2346 = vunpack.c.l.b16 %v2281
    %v2347 = vunpack.c.l.b16 %v2282
    %v2348 = vunpack.c.l.b16 %v2283
    %v2349 = vunpack.c.l.b16 %v2284
    %v2350 = vunpack.c.l.b16 %v2285
    %v2351 = vunpack.c.l.b16 %v2286
    %v2352 = vunpack.c.l.b16 %v2287
    %v2353 = vunpack.c.l.b16 %v2288
    %v2354 = vunpack.c.l.b16 %v2289
    %v2355 = vunpack.c.l.b16 %v2290
    %v2356 = vunpack.c.l.b16 %v2291
    %v2357 = vunpack.c.l.b16 %v2292
    %v2358 = vunpack.c.l.b16 %v2293
    %v2359 = vunpack.c.l.b16 %v2294
    %v2360 = vunpack.c.l.b16 %v2295
    %v2361 = vunpack.c.l.b16 %v2296
    %v2362 = vunpack.c.l.b16 %v2297
    %v2363 = vunpack.c.l.b16 %v2298
    %v2364 = vunpack.c.l.b16 %v2299
    %v2365 = vunpack.c.l.b16 %v2300
    %v2366 = vunpack.c.l.b16 %v2301
    %v2367 = vunpack.c.l.b16 %v2302
    %v2368 = vunpack.c.l.b16 %v2303
    %v2369 = vunpack.c.l.b16 %v2304
    %v2370 = vunpack.c.l.b16 %v2305
    %v2371 = vunpack.c.l.b16 %v2306
    %v2372 = vpack.c.b16 %v2341, %v2340
    %v2373 = vpack.c.b16 %v2343, %v2342
    %v2374 = vpack.c.b16 %v2345, %v2344
    %v2375 = vpack.c.b16 %v2347, %v2346
    %v2376 = vpack.c.b16 %v2349, %v2348
    %v2377 = vpack.c.b16 %v2351, %v2350
    %v2378 = vpack.c.b16 %v2353, %v2352
    %v2379 = vpack.c.b16 %v2355, %v2354
    %v2380 = vpack.c.b16 %v2357, %v2356
    %v2381 = vpack.c.b16 %v2359, %v2358
    %v2382 = vpack.c.b16 %v2361, %v2360
    %v2383 = vpack.c.b16 %v2363, %v2362
    %v2384 = vpack.c.b16 %v2365, %v2364
    %v2385 = vpack.c.b16 %v2367, %v2366
    %v2386 = vpack.c.b16 %v2369, %v2368
    %v2387 = vpack.c.b16 %v2371, %v2370
    %2404 = vmatpush.bf16.msra.mxu0 %v2379
    %2405 = vmatpush.bf16.msra.mxu0 %v2378
    %2406 = vmatpush.bf16.msra.mxu0 %v2377
    %2407 = vmatpush.bf16.msra.mxu0 %v2376
    %2408 = vmatpush.bf16.msra.mxu0 %v2375
    %2409 = vmatpush.bf16.msra.mxu0 %v2374
    %2410 = vmatpush.bf16.msra.mxu0 %v2373
    %2411 = vmatpush.bf16.msra.mxu0 %v2372
    %2412 = vmatmul.bf16.gmra.mxu0 %v2272
    %v2413 = vpop.f32.mrf.mxu0
    %v2414 = vadd.f32 %v2307, %v2413
    %v2415 = vpop.f32.mrf.mxu0
    %v2416 = vadd.f32 %v2307, %v2415
    %2417 = vdwg.mxu0
    %2418 = vmatpush.bf16.msra.mxu0 %v2387
    %2419 = vmatpush.bf16.msra.mxu0 %v2386
    %2420 = vmatpush.bf16.msra.mxu0 %v2385
    %2421 = vmatpush.bf16.msra.mxu0 %v2384
    %2422 = vmatpush.bf16.msra.mxu0 %v2383
    %2423 = vmatpush.bf16.msra.mxu0 %v2382
    %2424 = vmatpush.bf16.msra.mxu0 %v2381
    %2425 = vmatpush.bf16.msra.mxu0 %v2380
    %2426 = vmatmul.bf16.gmra.mxu0 %v2273
    %v2427 = vpop.f32.mrf.mxu0
    %v2428 = vadd.f32 %v2414, %v2427
    %v2429 = vpop.f32.mrf.mxu0
    %v2430 = vadd.f32 %v2416, %v2429
    %2431 = vdwg.mxu0
    %v2432 = vadd.f32 %v2428, %v2101
    %v2433 = vadd.f32 %v2430, %v2102
    %2434 = vadd.xlane.f32.xlu0 %v2432
    %v2435 = vpop.xlane.xlu0 %2434
    %2436 = vadd.xlane.f32.xlu0 %v2433
    %v2437 = vpop.xlane.xlu0 %2436
    %v2438 = vmul.f32 %v2435, %v98
    %v2439 = vmul.f32 %v2437, %v98
    %v2440 = vsub.f32 %v2432, %v2438
    %v2441 = vsub.f32 %v2433, %v2439
    %v2442 = vmul.f32 %v2440, %v2440
    %v2443 = vmul.f32 %v2441, %v2441
    %2444 = vadd.xlane.f32.xlu0 %v2442
    %v2445 = vpop.xlane.xlu0 %2444
    %2446 = vadd.xlane.f32.xlu0 %v2443
    %v2447 = vpop.xlane.xlu0 %2446
    %v2448 = vmul.f32 %v2445, %v98
    %v2449 = vmul.f32 %v2447, %v98
    %v2450 = vadd.f32 %v2448, 1e-05
    %v2451 = vadd.f32 %v2449, 1e-05
    %v2452 = vrsqrt.pop %v2450
    %v2453 = vmul.f32 %v2452, %v2450
    %v2454 = vmul.f32 %v2453, %v2452
    %v2455 = vmul.f32 0.5, %v2454
    %v2456 = vsub.f32 1.5, %v2455
    %v2457 = vmul.f32 %v2452, %v2456
    %vm2458 = vweird.f32 %v2450
    %vm2459 = vweird.f32 %v2452
    %vm2460 = vmor %vm2458, %vm2459
    %v2461 = vsel %vm2460, %v2452, %v2457
    %v2462 = vrsqrt.pop %v2451
    %v2463 = vmul.f32 %v2462, %v2451
    %v2464 = vmul.f32 %v2463, %v2462
    %v2465 = vmul.f32 0.5, %v2464
    %v2466 = vsub.f32 1.5, %v2465
    %v2467 = vmul.f32 %v2462, %v2466
    %vm2468 = vweird.f32 %v2451
    %vm2469 = vweird.f32 %v2462
    %vm2470 = vmor %vm2468, %vm2469
    %v2471 = vsel %vm2470, %v2462, %v2467
    %v2472 = vmul.f32 %v2440, %v2461
    %v2473 = vmul.f32 %v2441, %v2471
    %v2474 = vperm.slane %v1311, 4
    %v2475 = vmul.f32 %v2472, %v2474
    %v2476 = vmul.f32 %v2473, %v2474
    %v2477 = vperm.slane %v1311, 5
    %v2478 = vadd.f32 %v2475, %v2477
    %v2479 = vadd.f32 %v2476, %v2477
    %v2480 = vld [vmem:[%s12] sm:$0x3]
    %v2481 = vpack.c.bf16 %v2479, %v2478
    %v2482 = vld [vmem:[%s10] sm:$0xf]
    %v2483 = vld [vmem:[%s10 + $0x4] sm:$0xf]
    %v2484 = vld [vmem:[%s10 + $0x8] sm:$0xf]
    %v2485 = vld [vmem:[%s10 + $0xc] sm:$0xf]
    %v2486 = vld [vmem:[%s10 + $0x10] sm:$0xf]
    %v2487 = vld [vmem:[%s10 + $0x14] sm:$0xf]
    %v2488 = vld [vmem:[%s10 + $0x18] sm:$0xf]
    %v2489 = vld [vmem:[%s10 + $0x1c] sm:$0xf]
    %v2490 = vld [vmem:[%s10 + $0x20] sm:$0xf]
    %v2491 = vld [vmem:[%s10 + $0x24] sm:$0xf]
    %v2492 = vld [vmem:[%s10 + $0x28] sm:$0xf]
    %v2493 = vld [vmem:[%s10 + $0x2c] sm:$0xf]
    %v2494 = vld [vmem:[%s10 + $0x30] sm:$0xf]
    %v2495 = vld [vmem:[%s10 + $0x34] sm:$0xf]
    %v2496 = vld [vmem:[%s10 + $0x38] sm:$0xf]
    %v2497 = vld [vmem:[%s10 + $0x3c] sm:$0xf]
    %v2498 = vperm.slane %v2480, 0
    %v2515 = vunpack.c.l.b16 %v2482
    %v2516 = vunpack.c.l.b16 %v2483
    %v2517 = vunpack.c.l.b16 %v2484
    %v2518 = vunpack.c.l.b16 %v2485
    %v2519 = vunpack.c.l.b16 %v2486
    %v2520 = vunpack.c.l.b16 %v2487
    %v2521 = vunpack.c.l.b16 %v2488
    %v2522 = vunpack.c.l.b16 %v2489
    %v2523 = vunpack.c.l.b16 %v2490
    %v2524 = vunpack.c.l.b16 %v2491
    %v2525 = vunpack.c.l.b16 %v2492
    %v2526 = vunpack.c.l.b16 %v2493
    %v2527 = vunpack.c.l.b16 %v2494
    %v2528 = vunpack.c.l.b16 %v2495
    %v2529 = vunpack.c.l.b16 %v2496
    %v2530 = vunpack.c.l.b16 %v2497
    %v2531 = vpack.c.b16 %v2516, %v2515
    %v2532 = vpack.c.b16 %v2518, %v2517
    %v2533 = vpack.c.b16 %v2520, %v2519
    %v2534 = vpack.c.b16 %v2522, %v2521
    %v2535 = vpack.c.b16 %v2524, %v2523
    %v2536 = vpack.c.b16 %v2526, %v2525
    %v2537 = vpack.c.b16 %v2528, %v2527
    %v2538 = vpack.c.b16 %v2530, %v2529
    %2547 = vmatpush.bf16.msra.mxu0 %v2538
    %2548 = vmatpush.bf16.msra.mxu0 %v2537
    %2549 = vmatpush.bf16.msra.mxu0 %v2536
    %2550 = vmatpush.bf16.msra.mxu0 %v2535
    %2551 = vmatpush.bf16.msra.mxu0 %v2534
    %2552 = vmatpush.bf16.msra.mxu0 %v2533
    %2553 = vmatpush.bf16.msra.mxu0 %v2532
    %2554 = vmatpush.bf16.msra.mxu0 %v2531
    %2555 = vmatmul.bf16.gmra.mxu0 %v2481
    %v2556 = vpop.f32.mrf.mxu0
    %v2557 = vadd.f32 %v2498, %v2556
    %v2558 = vpop.f32.mrf.mxu0
    %v2559 = vadd.f32 %v2498, %v2558
    %2560 = vdwg.mxu0
    %v2561 = vmax.f32 %v2557, 0.0
    %v2562 = vmax.f32 %v2559, 0.0
    %v2563 = vpack.c.bf16 %v2562, %v2561
    %v2564 = vld [vmem:[%s11] sm:$0xf]
    %v2565 = vld [vmem:[%s11 + $0x4] sm:$0xf]
    %v2566 = vld [vmem:[%s11 + $0x8] sm:$0xf]
    %v2567 = vld [vmem:[%s11 + $0xc] sm:$0xf]
    %v2568 = vld [vmem:[%s11 + $0x10] sm:$0xf]
    %v2569 = vld [vmem:[%s11 + $0x14] sm:$0xf]
    %v2570 = vld [vmem:[%s11 + $0x18] sm:$0xf]
    %v2571 = vld [vmem:[%s11 + $0x1c] sm:$0xf]
    %v2572 = vperm.slane %v2480, 1
    %v2581 = vunpack.c.l.b16 %v2564
    %v2582 = vunpack.c.l.b16 %v2565
    %v2583 = vunpack.c.l.b16 %v2566
    %v2584 = vunpack.c.l.b16 %v2567
    %v2585 = vunpack.c.l.b16 %v2568
    %v2586 = vunpack.c.l.b16 %v2569
    %v2587 = vunpack.c.l.b16 %v2570
    %v2588 = vunpack.c.l.b16 %v2571
    %v2589 = vpack.c.b16 %v2582, %v2581
    %v2590 = vpack.c.b16 %v2584, %v2583
    %v2591 = vpack.c.b16 %v2586, %v2585
    %v2592 = vpack.c.b16 %v2588, %v2587
    %v2598 = vsel %vm801, %v2563, 0
    %2600 = vmatpush.bf16.msra.mxu0 0
    %2601 = vmatpush.bf16.msra.mxu0 0
    %2602 = vmatpush.bf16.msra.mxu0 0
    %2603 = vmatpush.bf16.msra.mxu0 0
    %2604 = vmatpush.bf16.msra.mxu0 %v2592
    %2605 = vmatpush.bf16.msra.mxu0 %v2591
    %2606 = vmatpush.bf16.msra.mxu0 %v2590
    %2607 = vmatpush.bf16.msra.mxu0 %v2589
    %2608 = vmatmul.bf16.gmra.mxu0 %v2598
    %v2609 = vpop.f32.mrf.mxu0
    %v2610 = vadd.f32 %v2572, %v2609
    %v2611 = vpop.f32.mrf.mxu0
    %v2612 = vadd.f32 %v2572, %v2611
    %2613 = vdwg.mxu0
    %2614 = vst [vmem:[%s13] sm:$0xff] %v2610
    %2615 = vst [vmem:[%s13 + $0x8] sm:$0xff] %v2612
    // Predicated region
    $region62: #{roberta_classifier_forward.1} parent=1 // pred_check
      _
    $region63: #{roberta_classifier_forward.1} parent=1 // pred_check_branch
      %2617 = sbr.rel (0) target = $region65
    $region64: #{roberta_classifier_forward.1} parent=1 // pred_region
      _
    $region65: #{roberta_classifier_forward.1} parent=1 // pred_fallthru
      _
    // Predicated region
    $region66: #{roberta_classifier_forward.1} parent=1 // pred_check
      _
    $region67: #{roberta_classifier_forward.1} parent=1 // pred_check_branch
      %2619 = sbr.rel (0) target = $region69
    $region68: #{roberta_classifier_forward.1} parent=1 // pred_region
      _
    $region69: #{roberta_classifier_forward.1} parent=1 // pred_fallthru
      _
    %2620 = vsyncpa [#allocation3], 1
    %2621 = vsyncpa [#allocation5], 1

</llo_original>
